<compile_context>
chip_gen: v7x
topology: tpu7x:2x2x1
jax: 0.10.0
libtpu: 0.0.40
codegen_flags: <defaults>
</compile_context>

<pallas_src>
import functools

import jax
import jax.numpy as jnp
from jax.experimental import pallas as pl
from jax.experimental.pallas import tpu as pltpu


_LANE = 128           # TPU lane width: hidden & label dims are padded to this
_NEG_INF = -1e30      # pad value for padded logits before log_softmax


def _round_up(n, m=8):
    return ((n + m - 1) // m) * m


def _slab_layout(embedding_dim, hidden_pad):
    """Row offsets of each parameter inside the packed (rows, 4*HP) slab.
    Every section starts at a sublane-aligned (multiple-of-8) row."""
    off = {}
    r = 0
    off["wih"] = r;  r += _round_up(embedding_dim)   # (E, 4*HP)
    off["whh"] = r;  r += hidden_pad                 # (HP, 4*HP)
    off["bias"] = r; r += 8                          # (1, 4*HP) in row 0
    off["wlab"] = r; r += hidden_pad                 # (HP, LP) in lanes [0,LP)
    off["blab"] = r; r += 8                          # (1, LP)  in row 0
    off["rows"] = r
    return off


def lstm_classifier_kernel(tok_ref, len_ref, emb_ref, slab_ref, out_ref, gx_ref,
                           *, E, HP, LP, SEQ, TB, off):
    """One grid step = one block of TB sentences.

    tok_ref : (SEQ*TB, 1) int32, time-major token ids for this block
    len_ref : (TB, 1)     int32, sentence lengths (<= SEQ)
    emb_ref : (VOCAB, E)  f32, VMEM-resident embedding table
    slab_ref: (ROWS, 4*HP) f32, VMEM-resident packed parameters
    out_ref : (TB, LP)    f32, log-probs (lanes >= label_size are padding)
    gx_ref  : (SEQ*TB, 4*HP) f32 VMEM scratch, time-major input projection
    """
    vocab = emb_ref.shape[0]

    # --- embedding lookup fused onto the MXU (one-hot gather) ---------------
    tok = tok_ref[...]                                              # (SEQ*TB, 1)
    iota = jax.lax.broadcasted_iota(jnp.int32, (SEQ * TB, vocab), 1)
    onehot = (iota == tok).astype(jnp.float32)                      # (SEQ*TB, V)
    embeds = jnp.dot(onehot, emb_ref[...],
                     preferred_element_type=jnp.float32)            # (SEQ*TB, E)

    # --- hoisted input projection for all timesteps, into VMEM scratch ------
    wih = slab_ref[off["wih"]:off["wih"] + E, :]                    # (E, 4*HP)
    bias = slab_ref[off["bias"]:off["bias"] + 1, :]                 # (1, 4*HP)
    gx_ref[...] = (jnp.dot(embeds, wih, preferred_element_type=jnp.float32)
                   + bias)                                          # (SEQ*TB, 4*HP)

    # --- recurrence: h/c carried as (TB, HP) values --------------------------
    whh = slab_ref[off["whh"]:off["whh"] + HP, :]                   # (HP, 4*HP)
    lens = len_ref[...]                                             # (TB, 1)
    h = jnp.zeros((TB, HP), jnp.float32)                            # init_hidden()
    c = jnp.zeros((TB, HP), jnp.float32)

    for t in range(SEQ):                                            # unrolled
        # static contiguous row read of this step's precomputed gate inputs
        gates = gx_ref[t * TB:(t + 1) * TB, :] + jnp.dot(
            h, whh, preferred_element_type=jnp.float32)             # (TB, 4*HP)
        sig = jax.nn.sigmoid(gates[:, :3 * HP])                     # [i, f, o]
        i_g = sig[:, 0 * HP:1 * HP]
        f_g = sig[:, 1 * HP:2 * HP]
        o_g = sig[:, 2 * HP:3 * HP]
        g_g = jnp.tanh(gates[:, 3 * HP:4 * HP])
        c_new = f_g * c + i_g * g_g
        h_new = o_g * jnp.tanh(c_new)
        valid = t < lens                                            # (TB, 1)
        c = jnp.where(valid, c_new, c)
        h = jnp.where(valid, h_new, h)

    # --- hidden2label on the final hidden state ------------------------------
    wlab = slab_ref[off["wlab"]:off["wlab"] + HP, 0:LP]             # (HP, LP)
    blab = slab_ref[off["blab"]:off["blab"] + 1, 0:LP]              # (1, LP)
    y = jnp.dot(h, wlab, preferred_element_type=jnp.float32) + blab

    # dropout (p=0.8) -> identity at inference.

    # log_softmax along labels; padded logits are -1e30 so exp(..) = 0.
    m = jnp.max(y, axis=-1, keepdims=True)
    shifted = y - m
    logz = jnp.log(jnp.sum(jnp.exp(shifted), axis=-1, keepdims=True))
    out_ref[...] = shifted - logz


def init_params(key, vocab_size, embedding_dim, hidden_dim, label_size):
    """Deterministic synthetic parameters matching the nn.Module shapes."""
    ks = jax.random.split(key, 7)
    H = hidden_dim
    bound = 1.0 / jnp.sqrt(jnp.float32(H))
    return {
        "embedding": jax.random.normal(ks[0], (vocab_size, embedding_dim),
                                       jnp.float32),
        "w_ih": jax.random.uniform(ks[1], (4 * H, embedding_dim),
                                   jnp.float32, -bound, bound),
        "w_hh": jax.random.uniform(ks[2], (4 * H, H),
                                   jnp.float32, -bound, bound),
        "b_ih": jax.random.uniform(ks[3], (4 * H,), jnp.float32, -bound, bound),
        "b_hh": jax.random.uniform(ks[4], (4 * H,), jnp.float32, -bound, bound),
        "w_label": jax.random.uniform(ks[5], (label_size, H),
                                      jnp.float32, -bound, bound),
        "b_label": jax.random.uniform(ks[6], (label_size,),
                                      jnp.float32, -bound, bound),
    }


def _split_gates(w, H):
    # PyTorch LSTM gate order along dim 0: [i, f, g, o].
    return w[0:H], w[H:2 * H], w[2 * H:3 * H], w[3 * H:4 * H]


def prepare_params(params, embedding_dim, hidden_dim, label_size,
                   hidden_pad=_LANE, label_pad=_LANE):
    """One-time prep: gate reorder to [i,f,o,g], zero-pad hidden dim to 128,
    pre-transpose, fold b_ih+b_hh, pad label head, and pack everything into a
    single contiguous f32 slab so the kernel gets one resident parameter DMA."""
    E, H, HP, L, LP = embedding_dim, hidden_dim, hidden_pad, label_size, label_pad
    W = 4 * HP
    off = _slab_layout(E, HP)

    def pad_rows(x, n):
        return jnp.pad(x, ((0, n - x.shape[0]), (0, 0)))

    def pad_vec(v, n):
        return jnp.pad(v, (0, n - v.shape[0]))

    # W_ih: (4H, E) -> (E, 4*HP), gates reordered [i, f, o, g].
    i_w, f_w, g_w, o_w = _split_gates(params["w_ih"], H)
    w_ih_t = jnp.concatenate(
        [pad_rows(i_w, HP), pad_rows(f_w, HP),
         pad_rows(o_w, HP), pad_rows(g_w, HP)], axis=0).T            # (E, 4*HP)

    # W_hh: (4H, H) -> (HP, 4*HP).
    i_h, f_h, g_h, o_h = _split_gates(params["w_hh"], H)
    w_hh_blk = jnp.concatenate(
        [pad_rows(i_h, HP), pad_rows(f_h, HP),
         pad_rows(o_h, HP), pad_rows(g_h, HP)], axis=0)              # (4*HP, H)
    w_hh_t = jnp.pad(w_hh_blk, ((0, 0), (0, HP - H))).T              # (HP, 4*HP)

    # bias = b_ih + b_hh, reordered + zero-padded (padded h/c stay exactly 0).
    b = params["b_ih"] + params["b_hh"]
    i_b, f_b, g_b, o_b = _split_gates(b, H)
    bias = jnp.concatenate(
        [pad_vec(i_b, HP), pad_vec(f_b, HP),
         pad_vec(o_b, HP), pad_vec(g_b, HP)]).reshape(1, W)

    # hidden2label: (L, H) -> (HP, LP); padded biases = -1e30 so padded logits
    # vanish under log_softmax.
    w_lab_t = jnp.pad(params["w_label"], ((0, LP - L), (0, HP - H))).T  # (HP, LP)
    b_lab = jnp.concatenate(
        [params["b_label"],
         jnp.full((LP - L,), _NEG_INF, jnp.float32)]).reshape(1, LP)

    slab = jnp.zeros((off["rows"], W), jnp.float32)
    slab = slab.at[off["wih"]:off["wih"] + E, :].set(w_ih_t)
    slab = slab.at[off["whh"]:off["whh"] + HP, :].set(w_hh_t)
    slab = slab.at[off["bias"]:off["bias"] + 1, :].set(bias)
    slab = slab.at[off["wlab"]:off["wlab"] + HP, :LP].set(w_lab_t)
    slab = slab.at[off["blab"]:off["blab"] + 1, :LP].set(b_lab)

    return {"embedding": params["embedding"].astype(jnp.float32), "slab": slab}


@functools.partial(jax.jit, static_argnames=("label_size", "block_b"))
def lstm_classifier_forward_batch(tokens, lengths, prepped, *,
                                  label_size, block_b=8):
    """Batched forward. tokens: (B, SEQ) int32 (bucketed/padded to SEQ),
    lengths: (B,) int32 real lengths. Returns (B, label_size) log-probs."""
    tokens = tokens.astype(jnp.int32)
    lengths = lengths.astype(jnp.int32)
    B, SEQ = tokens.shape
    TB = block_b
    NB = -(-B // TB)
    Bp = NB * TB

    # Pad batch to a multiple of the per-grid-step block (len=0 rows are inert).
    tok_p = jnp.zeros((Bp, SEQ), jnp.int32).at[:B].set(tokens)
    len_p = jnp.zeros((Bp,), jnp.int32).at[:B].set(lengths)

    # Time-major within each block so the kernel reads each step's gate rows
    # as one contiguous (TB, 4*HP) slab.
    tok_tm = tok_p.reshape(NB, TB, SEQ).transpose(0, 2, 1).reshape(NB * SEQ * TB, 1)
    len_col = len_p.reshape(Bp, 1)

    emb = prepped["embedding"]
    slab = prepped["slab"]
    E = emb.shape[1]
    W = slab.shape[1]
    HP = W // 4
    off = _slab_layout(E, HP)

    kernel = functools.partial(lstm_classifier_kernel,
                               E=E, HP=HP, LP=_LANE, SEQ=SEQ, TB=TB, off=off)

    grid_spec = pltpu.PrefetchScalarGridSpec(
        num_scalar_prefetch=0,
        grid=(NB,),
        in_specs=[
            pl.BlockSpec((SEQ * TB, 1), lambda b: (b, 0)),   # token ids (block)
            pl.BlockSpec((TB, 1), lambda b: (b, 0)),         # lengths (block)
            pl.BlockSpec(emb.shape, lambda b: (0, 0)),       # embedding: resident
            pl.BlockSpec(slab.shape, lambda b: (0, 0)),      # params: resident
        ],
        out_specs=pl.BlockSpec((TB, _LANE), lambda b: (b, 0)),
        scratch_shapes=[pltpu.VMEM((SEQ * TB, W), jnp.float32)],
    )

    out = pl.pallas_call(
        kernel,
        out_shape=jax.ShapeDtypeStruct((Bp, _LANE), jnp.float32),
        grid_spec=grid_spec,
        compiler_params=pltpu.CompilerParams(
            dimension_semantics=("parallel",)),   # v7x: split batch over 2 TCs
    )(tok_tm, len_col, emb, slab)

    return out[:B, :label_size]


def lstm_classifier_forward(sentence, prepped, *, label_size):
    """Single-sentence forward matching the nn.Module: returns (1, label_size)."""
    tokens = sentence.reshape(1, -1)
    lengths = jnp.array([sentence.shape[0]], jnp.int32)
    return lstm_classifier_forward_batch(tokens, lengths, prepped,
                                         label_size=label_size)


if __name__ == "__main__":
    # Small shapes consistent with the module's forward.
    VOCAB = 50
    EMBED = 16
    HIDDEN = 32
    LABELS = 4
    SEQ = 8       # bucket length; per-sentence lengths <= SEQ are masked
    BATCH = 16
    BLOCK_B = 8

    key = jax.random.PRNGKey(0)
    pkey, tkey, lkey = jax.random.split(key, 3)
    params = init_params(pkey, VOCAB, EMBED, HIDDEN, LABELS)
    prepped = prepare_params(params, EMBED, HIDDEN, LABELS)

    tokens = jax.random.randint(tkey, (BATCH, SEQ), 0, VOCAB, dtype=jnp.int32)
    lengths = jax.random.randint(lkey, (BATCH,), 3, SEQ + 1, dtype=jnp.int32)

    # Batched path (main optimization target).
    log_probs = lstm_classifier_forward_batch(tokens, lengths, prepped,
                                              label_size=LABELS,
                                              block_b=BLOCK_B)
    jax.block_until_ready(log_probs)
    assert log_probs.shape == (BATCH, LABELS)
    assert bool(jnp.isfinite(log_probs).all())
    # log_softmax rows should (approximately) normalize to 1 in prob space.
    row_sums = jnp.exp(log_probs).sum(axis=-1)
    assert bool(jnp.all(jnp.abs(row_sums - 1.0) < 1e-4))

    # Single-sentence path matching the original module signature.
    single = lstm_classifier_forward(tokens[0, :int(lengths[0])], prepped,
                                     label_size=LABELS)
    jax.block_until_ready(single)
    assert single.shape == (1, LABELS)
    assert bool(jnp.isfinite(single).all())

    print("KERNEL_OK")
</pallas_src>

<mosaic_0001>
module attributes {stable_mosaic.version = 11 : i64} {
  func.func @lstm_classifier_kernel(%arg0: i32, %arg1: memref<64x1xi32, #tpu.memory_space<vmem>>, %arg2: memref<8x1xi32, #tpu.memory_space<vmem>>, %arg3: memref<50x16xf32, #tpu.memory_space<vmem>>, %arg4: memref<288x512xf32, #tpu.memory_space<vmem>>, %arg5: memref<8x128xf32, #tpu.memory_space<vmem>>, %arg6: memref<64x512xf32, #tpu.memory_space<vmem>>) attributes {dimension_semantics = [#tpu.dimension_semantics<parallel>], iteration_bounds = array<i64: 2>, scalar_prefetch = 0 : i64, scratch_operands = 1 : i64, tpu.core_type = #tpu.core_type<tc>, window_params = [{transform_indices = @transform_0, window_bounds = array<i64: 64, 1>}, {transform_indices = @transform_1, window_bounds = array<i64: 8, 1>}, {pipeline_mode = #tpu.pipeline_mode<synchronous>, transform_indices = @transform_2, window_bounds = array<i64: 50, 16>}, {pipeline_mode = #tpu.pipeline_mode<synchronous>, transform_indices = @transform_3, window_bounds = array<i64: 288, 512>}, {transform_indices = @transform_4, window_bounds = array<i64: 8, 128>}]} {
    %c0 = arith.constant 0 : index
    %c0_0 = arith.constant 0 : index
    %0 = vector.load %arg1[%c0, %c0_0] : memref<64x1xi32, #tpu.memory_space<vmem>>, vector<64x1xi32>
    %1 = tpu.iota {dimensions = array<i32: 1>} : vector<64x50xi32>
    %2 = vector.broadcast %0 : vector<64x1xi32> to vector<64x50xi32>
    %3 = arith.cmpi eq, %1, %2 : vector<64x50xi32>
    %4 = arith.extui %3 : vector<64x50xi1> to vector<64x50xi32>
    %5 = arith.sitofp %4 : vector<64x50xi32> to vector<64x50xf32>
    %c0_1 = arith.constant 0 : index
    %c0_2 = arith.constant 0 : index
    %6 = vector.load %arg3[%c0_1, %c0_2] : memref<50x16xf32, #tpu.memory_space<vmem>>, vector<50x16xf32>
    %cst = arith.constant dense<0.000000e+00> : vector<64x16xf32>
    %7 = tpu.matmul %5, %6, %cst {dimension_numbers = #tpu.dot_dimension_numbers<[1], [0], [0], [1], [0, 0, 1, 1], [], []>} : vector<64x50xf32>, vector<50x16xf32>, vector<64x16xf32> -> vector<64x16xf32>
    %c0_3 = arith.constant 0 : index
    %c0_4 = arith.constant 0 : index
    %8 = vector.load %arg4[%c0_3, %c0_4] : memref<288x512xf32, #tpu.memory_space<vmem>>, vector<16x512xf32>
    %c144 = arith.constant 144 : index
    %c0_5 = arith.constant 0 : index
    %9 = vector.load %arg4[%c144, %c0_5] : memref<288x512xf32, #tpu.memory_space<vmem>>, vector<1x512xf32>
    %cst_6 = arith.constant dense<0.000000e+00> : vector<64x512xf32>
    %10 = tpu.matmul %7, %8, %cst_6 {dimension_numbers = #tpu.dot_dimension_numbers<[1], [0], [0], [1], [0, 0, 1, 1], [], []>} : vector<64x16xf32>, vector<16x512xf32>, vector<64x512xf32> -> vector<64x512xf32>
    %11 = vector.broadcast %9 : vector<1x512xf32> to vector<64x512xf32>
    %12 = arith.addf %10, %11 : vector<64x512xf32>
    %c0_7 = arith.constant 0 : index
    %c0_8 = arith.constant 0 : index
    %13 = vector.load %arg6[%c0_7, %c0_8] : memref<64x512xf32, #tpu.memory_space<vmem>>, vector<64x512xf32>
    tpu.vector_store %arg6[%c0_7, %c0_8], %12 {strides = array<i32>} : memref<64x512xf32, #tpu.memory_space<vmem>>, vector<64x512xf32>,
    %c16 = arith.constant 16 : index
    %c0_9 = arith.constant 0 : index
    %14 = vector.load %arg4[%c16, %c0_9] : memref<288x512xf32, #tpu.memory_space<vmem>>, vector<128x512xf32>
    %c0_10 = arith.constant 0 : index
    %c0_11 = arith.constant 0 : index
    %15 = vector.load %arg2[%c0_10, %c0_11] : memref<8x1xi32, #tpu.memory_space<vmem>>, vector<8x1xi32>
    %cst_12 = arith.constant 0.000000e+00 : f32
    %16 = vector.broadcast %cst_12 : f32 to vector<8x128xf32>
    %cst_13 = arith.constant 0.000000e+00 : f32
    %17 = vector.broadcast %cst_13 : f32 to vector<8x128xf32>
    %c0_14 = arith.constant 0 : index
    %c0_15 = arith.constant 0 : index
    %18 = vector.load %arg6[%c0_14, %c0_15] : memref<64x512xf32, #tpu.memory_space<vmem>>, vector<8x512xf32>
    %cst_16 = arith.constant dense<0.000000e+00> : vector<8x512xf32>
    %19 = tpu.matmul %16, %14, %cst_16 {dimension_numbers = #tpu.dot_dimension_numbers<[1], [0], [0], [1], [0, 0, 1, 1], [], []>} : vector<8x128xf32>, vector<128x512xf32>, vector<8x512xf32> -> vector<8x512xf32>
    %20 = arith.addf %18, %19 : vector<8x512xf32>
    %21 = vector.extract_strided_slice %20 {offsets = [0, 0], sizes = [8, 384], strides = [1, 1]} : vector<8x512xf32> to vector<8x384xf32>
    %22 = arith.negf %21 : vector<8x384xf32>
    %23 = math.exp %22 : vector<8x384xf32>
    %cst_17 = arith.constant 1.000000e+00 : f32
    %24 = vector.broadcast %cst_17 : f32 to vector<8x384xf32>
    %25 = arith.addf %24, %23 : vector<8x384xf32>
    %26 = arith.divf %24, %25 : vector<8x384xf32>
    %27 = vector.extract_strided_slice %26 {offsets = [0, 0], sizes = [8, 128], strides = [1, 1]} : vector<8x384xf32> to vector<8x128xf32>
    %28 = vector.extract_strided_slice %26 {offsets = [0, 128], sizes = [8, 128], strides = [1, 1]} : vector<8x384xf32> to vector<8x128xf32>
    %29 = vector.extract_strided_slice %26 {offsets = [0, 256], sizes = [8, 128], strides = [1, 1]} : vector<8x384xf32> to vector<8x128xf32>
    %30 = vector.extract_strided_slice %20 {offsets = [0, 384], sizes = [8, 128], strides = [1, 1]} : vector<8x512xf32> to vector<8x128xf32>
    %31 = math.tanh %30 : vector<8x128xf32>
    %32 = arith.mulf %28, %17 : vector<8x128xf32>
    %33 = arith.mulf %27, %31 : vector<8x128xf32>
    %34 = arith.addf %32, %33 : vector<8x128xf32>
    %35 = math.tanh %34 : vector<8x128xf32>
    %36 = arith.mulf %29, %35 : vector<8x128xf32>
    %c0_i32 = arith.constant 0 : i32
    %37 = vector.broadcast %c0_i32 : i32 to vector<8x1xi32>
    %38 = arith.cmpi sgt, %15, %37 : vector<8x1xi32>
    %39 = vector.shape_cast %38 : vector<8x1xi1> to vector<8x1xi1>
    %40 = vector.broadcast %39 : vector<8x1xi1> to vector<8x128xi1>
    %41 = arith.select %40, %34, %17 : vector<8x128xi1>, vector<8x128xf32>
    %42 = vector.shape_cast %38 : vector<8x1xi1> to vector<8x1xi1>
    %43 = vector.broadcast %42 : vector<8x1xi1> to vector<8x128xi1>
    %44 = arith.select %43, %36, %16 : vector<8x128xi1>, vector<8x128xf32>
    %c8 = arith.constant 8 : index
    %c0_18 = arith.constant 0 : index
    %45 = vector.load %arg6[%c8, %c0_18] : memref<64x512xf32, #tpu.memory_space<vmem>>, vector<8x512xf32>
    %cst_19 = arith.constant dense<0.000000e+00> : vector<8x512xf32>
    %46 = tpu.matmul %44, %14, %cst_19 {dimension_numbers = #tpu.dot_dimension_numbers<[1], [0], [0], [1], [0, 0, 1, 1], [], []>} : vector<8x128xf32>, vector<128x512xf32>, vector<8x512xf32> -> vector<8x512xf32>
    %47 = arith.addf %45, %46 : vector<8x512xf32>
    %48 = vector.extract_strided_slice %47 {offsets = [0, 0], sizes = [8, 384], strides = [1, 1]} : vector<8x512xf32> to vector<8x384xf32>
    %49 = arith.negf %48 : vector<8x384xf32>
    %50 = math.exp %49 : vector<8x384xf32>
    %cst_20 = arith.constant 1.000000e+00 : f32
    %51 = vector.broadcast %cst_20 : f32 to vector<8x384xf32>
    %52 = arith.addf %51, %50 : vector<8x384xf32>
    %53 = arith.divf %51, %52 : vector<8x384xf32>
    %54 = vector.extract_strided_slice %53 {offsets = [0, 0], sizes = [8, 128], strides = [1, 1]} : vector<8x384xf32> to vector<8x128xf32>
    %55 = vector.extract_strided_slice %53 {offsets = [0, 128], sizes = [8, 128], strides = [1, 1]} : vector<8x384xf32> to vector<8x128xf32>
    %56 = vector.extract_strided_slice %53 {offsets = [0, 256], sizes = [8, 128], strides = [1, 1]} : vector<8x384xf32> to vector<8x128xf32>
    %57 = vector.extract_strided_slice %47 {offsets = [0, 384], sizes = [8, 128], strides = [1, 1]} : vector<8x512xf32> to vector<8x128xf32>
    %58 = math.tanh %57 : vector<8x128xf32>
    %59 = arith.mulf %55, %41 : vector<8x128xf32>
    %60 = arith.mulf %54, %58 : vector<8x128xf32>
    %61 = arith.addf %59, %60 : vector<8x128xf32>
    %62 = math.tanh %61 : vector<8x128xf32>
    %63 = arith.mulf %56, %62 : vector<8x128xf32>
    %c1_i32 = arith.constant 1 : i32
    %64 = vector.broadcast %c1_i32 : i32 to vector<8x1xi32>
    %65 = arith.cmpi sgt, %15, %64 : vector<8x1xi32>
    %66 = vector.shape_cast %65 : vector<8x1xi1> to vector<8x1xi1>
    %67 = vector.broadcast %66 : vector<8x1xi1> to vector<8x128xi1>
    %68 = arith.select %67, %61, %41 : vector<8x128xi1>, vector<8x128xf32>
    %69 = vector.shape_cast %65 : vector<8x1xi1> to vector<8x1xi1>
    %70 = vector.broadcast %69 : vector<8x1xi1> to vector<8x128xi1>
    %71 = arith.select %70, %63, %44 : vector<8x128xi1>, vector<8x128xf32>
    %c16_21 = arith.constant 16 : index
    %c0_22 = arith.constant 0 : index
    %72 = vector.load %arg6[%c16_21, %c0_22] : memref<64x512xf32, #tpu.memory_space<vmem>>, vector<8x512xf32>
    %cst_23 = arith.constant dense<0.000000e+00> : vector<8x512xf32>
    %73 = tpu.matmul %71, %14, %cst_23 {dimension_numbers = #tpu.dot_dimension_numbers<[1], [0], [0], [1], [0, 0, 1, 1], [], []>} : vector<8x128xf32>, vector<128x512xf32>, vector<8x512xf32> -> vector<8x512xf32>
    %74 = arith.addf %72, %73 : vector<8x512xf32>
    %75 = vector.extract_strided_slice %74 {offsets = [0, 0], sizes = [8, 384], strides = [1, 1]} : vector<8x512xf32> to vector<8x384xf32>
    %76 = arith.negf %75 : vector<8x384xf32>
    %77 = math.exp %76 : vector<8x384xf32>
    %cst_24 = arith.constant 1.000000e+00 : f32
    %78 = vector.broadcast %cst_24 : f32 to vector<8x384xf32>
    %79 = arith.addf %78, %77 : vector<8x384xf32>
    %80 = arith.divf %78, %79 : vector<8x384xf32>
    %81 = vector.extract_strided_slice %80 {offsets = [0, 0], sizes = [8, 128], strides = [1, 1]} : vector<8x384xf32> to vector<8x128xf32>
    %82 = vector.extract_strided_slice %80 {offsets = [0, 128], sizes = [8, 128], strides = [1, 1]} : vector<8x384xf32> to vector<8x128xf32>
    %83 = vector.extract_strided_slice %80 {offsets = [0, 256], sizes = [8, 128], strides = [1, 1]} : vector<8x384xf32> to vector<8x128xf32>
    %84 = vector.extract_strided_slice %74 {offsets = [0, 384], sizes = [8, 128], strides = [1, 1]} : vector<8x512xf32> to vector<8x128xf32>
    %85 = math.tanh %84 : vector<8x128xf32>
    %86 = arith.mulf %82, %68 : vector<8x128xf32>
    %87 = arith.mulf %81, %85 : vector<8x128xf32>
    %88 = arith.addf %86, %87 : vector<8x128xf32>
    %89 = math.tanh %88 : vector<8x128xf32>
    %90 = arith.mulf %83, %89 : vector<8x128xf32>
    %c2_i32 = arith.constant 2 : i32
    %91 = vector.broadcast %c2_i32 : i32 to vector<8x1xi32>
    %92 = arith.cmpi sgt, %15, %91 : vector<8x1xi32>
    %93 = vector.shape_cast %92 : vector<8x1xi1> to vector<8x1xi1>
    %94 = vector.broadcast %93 : vector<8x1xi1> to vector<8x128xi1>
    %95 = arith.select %94, %88, %68 : vector<8x128xi1>, vector<8x128xf32>
    %96 = vector.shape_cast %92 : vector<8x1xi1> to vector<8x1xi1>
    %97 = vector.broadcast %96 : vector<8x1xi1> to vector<8x128xi1>
    %98 = arith.select %97, %90, %71 : vector<8x128xi1>, vector<8x128xf32>
    %c24 = arith.constant 24 : index
    %c0_25 = arith.constant 0 : index
    %99 = vector.load %arg6[%c24, %c0_25] : memref<64x512xf32, #tpu.memory_space<vmem>>, vector<8x512xf32>
    %cst_26 = arith.constant dense<0.000000e+00> : vector<8x512xf32>
    %100 = tpu.matmul %98, %14, %cst_26 {dimension_numbers = #tpu.dot_dimension_numbers<[1], [0], [0], [1], [0, 0, 1, 1], [], []>} : vector<8x128xf32>, vector<128x512xf32>, vector<8x512xf32> -> vector<8x512xf32>
    %101 = arith.addf %99, %100 : vector<8x512xf32>
    %102 = vector.extract_strided_slice %101 {offsets = [0, 0], sizes = [8, 384], strides = [1, 1]} : vector<8x512xf32> to vector<8x384xf32>
    %103 = arith.negf %102 : vector<8x384xf32>
    %104 = math.exp %103 : vector<8x384xf32>
    %cst_27 = arith.constant 1.000000e+00 : f32
    %105 = vector.broadcast %cst_27 : f32 to vector<8x384xf32>
    %106 = arith.addf %105, %104 : vector<8x384xf32>
    %107 = arith.divf %105, %106 : vector<8x384xf32>
    %108 = vector.extract_strided_slice %107 {offsets = [0, 0], sizes = [8, 128], strides = [1, 1]} : vector<8x384xf32> to vector<8x128xf32>
    %109 = vector.extract_strided_slice %107 {offsets = [0, 128], sizes = [8, 128], strides = [1, 1]} : vector<8x384xf32> to vector<8x128xf32>
    %110 = vector.extract_strided_slice %107 {offsets = [0, 256], sizes = [8, 128], strides = [1, 1]} : vector<8x384xf32> to vector<8x128xf32>
    %111 = vector.extract_strided_slice %101 {offsets = [0, 384], sizes = [8, 128], strides = [1, 1]} : vector<8x512xf32> to vector<8x128xf32>
    %112 = math.tanh %111 : vector<8x128xf32>
    %113 = arith.mulf %109, %95 : vector<8x128xf32>
    %114 = arith.mulf %108, %112 : vector<8x128xf32>
    %115 = arith.addf %113, %114 : vector<8x128xf32>
    %116 = math.tanh %115 : vector<8x128xf32>
    %117 = arith.mulf %110, %116 : vector<8x128xf32>
    %c3_i32 = arith.constant 3 : i32
    %118 = vector.broadcast %c3_i32 : i32 to vector<8x1xi32>
    %119 = arith.cmpi sgt, %15, %118 : vector<8x1xi32>
    %120 = vector.shape_cast %119 : vector<8x1xi1> to vector<8x1xi1>
    %121 = vector.broadcast %120 : vector<8x1xi1> to vector<8x128xi1>
    %122 = arith.select %121, %115, %95 : vector<8x128xi1>, vector<8x128xf32>
    %123 = vector.shape_cast %119 : vector<8x1xi1> to vector<8x1xi1>
    %124 = vector.broadcast %123 : vector<8x1xi1> to vector<8x128xi1>
    %125 = arith.select %124, %117, %98 : vector<8x128xi1>, vector<8x128xf32>
    %c32 = arith.constant 32 : index
    %c0_28 = arith.constant 0 : index
    %126 = vector.load %arg6[%c32, %c0_28] : memref<64x512xf32, #tpu.memory_space<vmem>>, vector<8x512xf32>
    %cst_29 = arith.constant dense<0.000000e+00> : vector<8x512xf32>
    %127 = tpu.matmul %125, %14, %cst_29 {dimension_numbers = #tpu.dot_dimension_numbers<[1], [0], [0], [1], [0, 0, 1, 1], [], []>} : vector<8x128xf32>, vector<128x512xf32>, vector<8x512xf32> -> vector<8x512xf32>
    %128 = arith.addf %126, %127 : vector<8x512xf32>
    %129 = vector.extract_strided_slice %128 {offsets = [0, 0], sizes = [8, 384], strides = [1, 1]} : vector<8x512xf32> to vector<8x384xf32>
    %130 = arith.negf %129 : vector<8x384xf32>
    %131 = math.exp %130 : vector<8x384xf32>
    %cst_30 = arith.constant 1.000000e+00 : f32
    %132 = vector.broadcast %cst_30 : f32 to vector<8x384xf32>
    %133 = arith.addf %132, %131 : vector<8x384xf32>
    %134 = arith.divf %132, %133 : vector<8x384xf32>
    %135 = vector.extract_strided_slice %134 {offsets = [0, 0], sizes = [8, 128], strides = [1, 1]} : vector<8x384xf32> to vector<8x128xf32>
    %136 = vector.extract_strided_slice %134 {offsets = [0, 128], sizes = [8, 128], strides = [1, 1]} : vector<8x384xf32> to vector<8x128xf32>
    %137 = vector.extract_strided_slice %134 {offsets = [0, 256], sizes = [8, 128], strides = [1, 1]} : vector<8x384xf32> to vector<8x128xf32>
    %138 = vector.extract_strided_slice %128 {offsets = [0, 384], sizes = [8, 128], strides = [1, 1]} : vector<8x512xf32> to vector<8x128xf32>
    %139 = math.tanh %138 : vector<8x128xf32>
    %140 = arith.mulf %136, %122 : vector<8x128xf32>
    %141 = arith.mulf %135, %139 : vector<8x128xf32>
    %142 = arith.addf %140, %141 : vector<8x128xf32>
    %143 = math.tanh %142 : vector<8x128xf32>
    %144 = arith.mulf %137, %143 : vector<8x128xf32>
    %c4_i32 = arith.constant 4 : i32
    %145 = vector.broadcast %c4_i32 : i32 to vector<8x1xi32>
    %146 = arith.cmpi sgt, %15, %145 : vector<8x1xi32>
    %147 = vector.shape_cast %146 : vector<8x1xi1> to vector<8x1xi1>
    %148 = vector.broadcast %147 : vector<8x1xi1> to vector<8x128xi1>
    %149 = arith.select %148, %142, %122 : vector<8x128xi1>, vector<8x128xf32>
    %150 = vector.shape_cast %146 : vector<8x1xi1> to vector<8x1xi1>
    %151 = vector.broadcast %150 : vector<8x1xi1> to vector<8x128xi1>
    %152 = arith.select %151, %144, %125 : vector<8x128xi1>, vector<8x128xf32>
    %c40 = arith.constant 40 : index
    %c0_31 = arith.constant 0 : index
    %153 = vector.load %arg6[%c40, %c0_31] : memref<64x512xf32, #tpu.memory_space<vmem>>, vector<8x512xf32>
    %cst_32 = arith.constant dense<0.000000e+00> : vector<8x512xf32>
    %154 = tpu.matmul %152, %14, %cst_32 {dimension_numbers = #tpu.dot_dimension_numbers<[1], [0], [0], [1], [0, 0, 1, 1], [], []>} : vector<8x128xf32>, vector<128x512xf32>, vector<8x512xf32> -> vector<8x512xf32>
    %155 = arith.addf %153, %154 : vector<8x512xf32>
    %156 = vector.extract_strided_slice %155 {offsets = [0, 0], sizes = [8, 384], strides = [1, 1]} : vector<8x512xf32> to vector<8x384xf32>
    %157 = arith.negf %156 : vector<8x384xf32>
    %158 = math.exp %157 : vector<8x384xf32>
    %cst_33 = arith.constant 1.000000e+00 : f32
    %159 = vector.broadcast %cst_33 : f32 to vector<8x384xf32>
    %160 = arith.addf %159, %158 : vector<8x384xf32>
    %161 = arith.divf %159, %160 : vector<8x384xf32>
    %162 = vector.extract_strided_slice %161 {offsets = [0, 0], sizes = [8, 128], strides = [1, 1]} : vector<8x384xf32> to vector<8x128xf32>
    %163 = vector.extract_strided_slice %161 {offsets = [0, 128], sizes = [8, 128], strides = [1, 1]} : vector<8x384xf32> to vector<8x128xf32>
    %164 = vector.extract_strided_slice %161 {offsets = [0, 256], sizes = [8, 128], strides = [1, 1]} : vector<8x384xf32> to vector<8x128xf32>
    %165 = vector.extract_strided_slice %155 {offsets = [0, 384], sizes = [8, 128], strides = [1, 1]} : vector<8x512xf32> to vector<8x128xf32>
    %166 = math.tanh %165 : vector<8x128xf32>
    %167 = arith.mulf %163, %149 : vector<8x128xf32>
    %168 = arith.mulf %162, %166 : vector<8x128xf32>
    %169 = arith.addf %167, %168 : vector<8x128xf32>
    %170 = math.tanh %169 : vector<8x128xf32>
    %171 = arith.mulf %164, %170 : vector<8x128xf32>
    %c5_i32 = arith.constant 5 : i32
    %172 = vector.broadcast %c5_i32 : i32 to vector<8x1xi32>
    %173 = arith.cmpi sgt, %15, %172 : vector<8x1xi32>
    %174 = vector.shape_cast %173 : vector<8x1xi1> to vector<8x1xi1>
    %175 = vector.broadcast %174 : vector<8x1xi1> to vector<8x128xi1>
    %176 = arith.select %175, %169, %149 : vector<8x128xi1>, vector<8x128xf32>
    %177 = vector.shape_cast %173 : vector<8x1xi1> to vector<8x1xi1>
    %178 = vector.broadcast %177 : vector<8x1xi1> to vector<8x128xi1>
    %179 = arith.select %178, %171, %152 : vector<8x128xi1>, vector<8x128xf32>
    %c48 = arith.constant 48 : index
    %c0_34 = arith.constant 0 : index
    %180 = vector.load %arg6[%c48, %c0_34] : memref<64x512xf32, #tpu.memory_space<vmem>>, vector<8x512xf32>
    %cst_35 = arith.constant dense<0.000000e+00> : vector<8x512xf32>
    %181 = tpu.matmul %179, %14, %cst_35 {dimension_numbers = #tpu.dot_dimension_numbers<[1], [0], [0], [1], [0, 0, 1, 1], [], []>} : vector<8x128xf32>, vector<128x512xf32>, vector<8x512xf32> -> vector<8x512xf32>
    %182 = arith.addf %180, %181 : vector<8x512xf32>
    %183 = vector.extract_strided_slice %182 {offsets = [0, 0], sizes = [8, 384], strides = [1, 1]} : vector<8x512xf32> to vector<8x384xf32>
    %184 = arith.negf %183 : vector<8x384xf32>
    %185 = math.exp %184 : vector<8x384xf32>
    %cst_36 = arith.constant 1.000000e+00 : f32
    %186 = vector.broadcast %cst_36 : f32 to vector<8x384xf32>
    %187 = arith.addf %186, %185 : vector<8x384xf32>
    %188 = arith.divf %186, %187 : vector<8x384xf32>
    %189 = vector.extract_strided_slice %188 {offsets = [0, 0], sizes = [8, 128], strides = [1, 1]} : vector<8x384xf32> to vector<8x128xf32>
    %190 = vector.extract_strided_slice %188 {offsets = [0, 128], sizes = [8, 128], strides = [1, 1]} : vector<8x384xf32> to vector<8x128xf32>
    %191 = vector.extract_strided_slice %188 {offsets = [0, 256], sizes = [8, 128], strides = [1, 1]} : vector<8x384xf32> to vector<8x128xf32>
    %192 = vector.extract_strided_slice %182 {offsets = [0, 384], sizes = [8, 128], strides = [1, 1]} : vector<8x512xf32> to vector<8x128xf32>
    %193 = math.tanh %192 : vector<8x128xf32>
    %194 = arith.mulf %190, %176 : vector<8x128xf32>
    %195 = arith.mulf %189, %193 : vector<8x128xf32>
    %196 = arith.addf %194, %195 : vector<8x128xf32>
    %197 = math.tanh %196 : vector<8x128xf32>
    %198 = arith.mulf %191, %197 : vector<8x128xf32>
    %c6_i32 = arith.constant 6 : i32
    %199 = vector.broadcast %c6_i32 : i32 to vector<8x1xi32>
    %200 = arith.cmpi sgt, %15, %199 : vector<8x1xi32>
    %201 = vector.shape_cast %200 : vector<8x1xi1> to vector<8x1xi1>
    %202 = vector.broadcast %201 : vector<8x1xi1> to vector<8x128xi1>
    %203 = arith.select %202, %196, %176 : vector<8x128xi1>, vector<8x128xf32>
    %204 = vector.shape_cast %200 : vector<8x1xi1> to vector<8x1xi1>
    %205 = vector.broadcast %204 : vector<8x1xi1> to vector<8x128xi1>
    %206 = arith.select %205, %198, %179 : vector<8x128xi1>, vector<8x128xf32>
    %c56 = arith.constant 56 : index
    %c0_37 = arith.constant 0 : index
    %207 = vector.load %arg6[%c56, %c0_37] : memref<64x512xf32, #tpu.memory_space<vmem>>, vector<8x512xf32>
    %cst_38 = arith.constant dense<0.000000e+00> : vector<8x512xf32>
    %208 = tpu.matmul %206, %14, %cst_38 {dimension_numbers = #tpu.dot_dimension_numbers<[1], [0], [0], [1], [0, 0, 1, 1], [], []>} : vector<8x128xf32>, vector<128x512xf32>, vector<8x512xf32> -> vector<8x512xf32>
    %209 = arith.addf %207, %208 : vector<8x512xf32>
    %210 = vector.extract_strided_slice %209 {offsets = [0, 0], sizes = [8, 384], strides = [1, 1]} : vector<8x512xf32> to vector<8x384xf32>
    %211 = arith.negf %210 : vector<8x384xf32>
    %212 = math.exp %211 : vector<8x384xf32>
    %cst_39 = arith.constant 1.000000e+00 : f32
    %213 = vector.broadcast %cst_39 : f32 to vector<8x384xf32>
    %214 = arith.addf %213, %212 : vector<8x384xf32>
    %215 = arith.divf %213, %214 : vector<8x384xf32>
    %216 = vector.extract_strided_slice %215 {offsets = [0, 0], sizes = [8, 128], strides = [1, 1]} : vector<8x384xf32> to vector<8x128xf32>
    %217 = vector.extract_strided_slice %215 {offsets = [0, 128], sizes = [8, 128], strides = [1, 1]} : vector<8x384xf32> to vector<8x128xf32>
    %218 = vector.extract_strided_slice %215 {offsets = [0, 256], sizes = [8, 128], strides = [1, 1]} : vector<8x384xf32> to vector<8x128xf32>
    %219 = vector.extract_strided_slice %209 {offsets = [0, 384], sizes = [8, 128], strides = [1, 1]} : vector<8x512xf32> to vector<8x128xf32>
    %220 = math.tanh %219 : vector<8x128xf32>
    %221 = arith.mulf %217, %203 : vector<8x128xf32>
    %222 = arith.mulf %216, %220 : vector<8x128xf32>
    %223 = arith.addf %221, %222 : vector<8x128xf32>
    %224 = math.tanh %223 : vector<8x128xf32>
    %225 = arith.mulf %218, %224 : vector<8x128xf32>
    %c7_i32 = arith.constant 7 : i32
    %226 = vector.broadcast %c7_i32 : i32 to vector<8x1xi32>
    %227 = arith.cmpi sgt, %15, %226 : vector<8x1xi32>
    %228 = vector.shape_cast %227 : vector<8x1xi1> to vector<8x1xi1>
    %229 = vector.broadcast %228 : vector<8x1xi1> to vector<8x128xi1>
    %230 = arith.select %229, %225, %206 : vector<8x128xi1>, vector<8x128xf32>
    %c152 = arith.constant 152 : index
    %c0_40 = arith.constant 0 : index
    %231 = vector.load %arg4[%c152, %c0_40] : memref<288x512xf32, #tpu.memory_space<vmem>>, vector<128x128xf32>
    %c280 = arith.constant 280 : index
    %c0_41 = arith.constant 0 : index
    %232 = vector.load %arg4[%c280, %c0_41] : memref<288x512xf32, #tpu.memory_space<vmem>>, vector<1x128xf32>
    %cst_42 = arith.constant dense<0.000000e+00> : vector<8x128xf32>
    %233 = tpu.matmul %230, %231, %cst_42 {dimension_numbers = #tpu.dot_dimension_numbers<[1], [0], [0], [1], [0, 0, 1, 1], [], []>} : vector<8x128xf32>, vector<128x128xf32>, vector<8x128xf32> -> vector<8x128xf32>
    %234 = vector.broadcast %232 : vector<1x128xf32> to vector<8x128xf32>
    %235 = arith.addf %233, %234 : vector<8x128xf32>
    %cst_43 = arith.constant dense<0xFF800000> : vector<8xf32>
    %236 = vector.multi_reduction <maximumf>, %235, %cst_43 [1] : vector<8x128xf32> to vector<8xf32>
    %237 = vector.shape_cast %236 : vector<8xf32> to vector<8x1xf32>
    %238 = vector.broadcast %237 : vector<8x1xf32> to vector<8x128xf32>
    %239 = arith.subf %235, %238 : vector<8x128xf32>
    %240 = math.exp %239 : vector<8x128xf32>
    %cst_44 = arith.constant dense<0.000000e+00> : vector<8xf32>
    %241 = vector.multi_reduction <add>, %240, %cst_44 [1] : vector<8x128xf32> to vector<8xf32>
    %242 = vector.shape_cast %241 : vector<8xf32> to vector<8x1xf32>
    %243 = math.log %242 : vector<8x1xf32>
    %244 = vector.broadcast %243 : vector<8x1xf32> to vector<8x128xf32>
    %245 = arith.subf %239, %244 : vector<8x128xf32>
    %c0_45 = arith.constant 0 : index
    %c0_46 = arith.constant 0 : index
    %246 = vector.load %arg5[%c0_45, %c0_46] : memref<8x128xf32, #tpu.memory_space<vmem>>, vector<8x128xf32>
    tpu.vector_store %arg5[%c0_45, %c0_46], %245 {strides = array<i32>} : memref<8x128xf32, #tpu.memory_space<vmem>>, vector<8x128xf32>,
    return
  }
  func.func @transform_0(%arg0: i32) -> (i32, i32) {
    %c0_i32 = arith.constant 0 : i32
    %c0_i32_0 = arith.constant 0 : i32
    return %arg0, %c0_i32 : i32, i32
  }
  func.func @transform_1(%arg0: i32) -> (i32, i32) {
    %c0_i32 = arith.constant 0 : i32
    %c0_i32_0 = arith.constant 0 : i32
    return %arg0, %c0_i32 : i32, i32
  }
  func.func @transform_2(%arg0: i32) -> (i32, i32) {
    %c0_i32 = arith.constant 0 : i32
    %c0_i32_0 = arith.constant 0 : i32
    %c0_i32_1 = arith.constant 0 : i32
    return %c0_i32, %c0_i32_0 : i32, i32
  }
  func.func @transform_3(%arg0: i32) -> (i32, i32) {
    %c0_i32 = arith.constant 0 : i32
    %c0_i32_0 = arith.constant 0 : i32
    %c0_i32_1 = arith.constant 0 : i32
    return %c0_i32, %c0_i32_0 : i32, i32
  }
  func.func @transform_4(%arg0: i32) -> (i32, i32) {
    %c0_i32 = arith.constant 0 : i32
    %c0_i32_0 = arith.constant 0 : i32
    return %arg0, %c0_i32 : i32, i32
  }
}

</mosaic_0001>

<llo_original>
// kernel: lstm_classifier_forward_batch.1
$region0: #{lstm_classifier_forward_batch.1}
  #allocation0 [shape = 'u32[]', space=smem, size = 0x4, offset = 0x4, fixed_abs, tag = 'smem constant byte address 0x4 - core index']
  #allocation1 [shape = 'u32[144,128]{1,0:T(1,128)}', space=vmem, size = 0x12000, scoped, tag = 'internal scratch']
  #allocation2 [shape = 'f32[64,512]{1,0:T(8,128)}', space=vmem, size = 0x20000, scoped, tag = 'scratch operand']
  %s0 = inlined_call_operand.vmem [shape: s32[128,1], index: 0, kind: input, shape index: {}]
  %s1 = inlined_call_operand.vmem [shape: s32[16,1], index: 1, kind: input, shape index: {}]
  %s2 = inlined_call_operand.vmem [shape: f32[50,16], index: 2, kind: input, shape index: {}]
  %s3 = inlined_call_operand.hbm [shape: f32[288,512], index: 3, kind: input, shape index: {}]
  %s4 = inlined_call_operand.vmem [shape: f32[16,128], index: 4, kind: output, shape index: {}]
  %s5 = sld [smem:[#allocation0]]
  $region53: #{lstm_classifier_forward_batch.1} parent=0
    _
  %s7 = ssub.s32 1, %s5
  %s8 = scalar_select 0, %s7, %s5
  $region1: #{lstm_classifier_forward_batch.1} parent=0
    #allocation3 [shape = 'u8[589824]{0}', space=vmem, size = 0x90000, scoped, tag = 'input window, operand 3, single buffered']
    #allocation4 [shape = 's32[2]{0}', space=sflag, size = 0x8, scoped, tag = 'scoped memory for lstm_classifier_forward_batch.1']
    %9 = vsyncpa [#allocation4], 0
    loop: start=0, step=1, limit=4
    $region2: #{lstm_classifier_forward_batch.1} parent=1 // loop_pre_header
      _
    $region3: #{lstm_classifier_forward_batch.1} parent=1 // loop_header
      %s11 = sphi 0, %s15
      %p12 = scmp.ge.s32.totalorder %s11, 4
      %s21 = sphi 0, %s23
      %s24 = sphi 0, %s21
      %s25 = sphi 0, %s24
      %s41 = sphi 0, %s25
      %s47 = sphi 0, %s49
      %s50 = sphi 0, %s47
      %s51 = sphi 0, %s50
      %s67 = sphi 0, %s51
      %s71 = sphi 0, %s71
      %s73 = sphi 0, %s71
      %s74 = sphi 0, %s73
      %s88 = sphi 0, %s74
      %s92 = sphi 0, %s92
      %s94 = sphi 0, %s92
      %s95 = sphi 0, %s94
      %s109 = sphi 0, %s95
      %s115 = sphi 0, %s117
      %s118 = sphi 0, %s115
      %s119 = sphi 0, %s118
      %s135 = sphi 0, %s119
    $region4: #{lstm_classifier_forward_batch.1} parent=1 // loop_header_branch
      %14 = sbr.rel (%p12) target = $region8
    $region5: #{lstm_classifier_forward_batch.1} parent=1 // loop_body
      %s16 = ssub.s32 %s11, 1
      %s17 = ssub.s32 %s11, 2
      %s18 = sadd.s32 %s11, 1
      %s19 = ssub.s32 %s11, %s18
      %p20 = scmp.eq.s32.totalorder %s19, 0
      %s22 = sadd.s32 %s21, 1
      %s23 = scalar_select %p20, %s21, %s22
      %p26 = pneg %p20
      %p27 = scmp.eq.s32.totalorder %s11, 1
      %p28 = por %p26, %p27
      %p29 = scmp.ne.s32.totalorder %s21, %s24
      %p30 = scmp.eq.s32.totalorder %s11, 0
      %p31 = por %p29, %p30
      %p32 = scmp.ne.s32.totalorder %s21, %s24
      %p33 = scmp.eq.s32.totalorder %s16, 1
      %p34 = por %p32, %p33
      %p35 = scmp.ne.s32.totalorder %s24, %s25
      %p36 = scmp.eq.s32.totalorder %s16, 0
      %p37 = por %p35, %p36
      %p38 = scmp.ne.s32.totalorder %s24, %s25
      %p39 = scmp.eq.s32.totalorder %s17, 1
      %p40 = por %p38, %p39
      %p42 = scmp.ne.s32.totalorder %s25, %s41
      %p43 = scmp.eq.s32.totalorder %s17, 0
      %p44 = por %p42, %p43
      %s45 = ssub.s32 %s11, %s18
      %p46 = scmp.eq.s32.totalorder %s45, 0
      %s48 = sadd.s32 %s47, 1
      %s49 = scalar_select %p46, %s47, %s48
      %p52 = pneg %p46
      %p53 = scmp.eq.s32.totalorder %s11, 1
      %p54 = por %p52, %p53
      %p55 = scmp.ne.s32.totalorder %s47, %s50
      %p56 = scmp.eq.s32.totalorder %s11, 0
      %p57 = por %p55, %p56
      %p58 = scmp.ne.s32.totalorder %s47, %s50
      %p59 = scmp.eq.s32.totalorder %s16, 1
      %p60 = por %p58, %p59
      %p61 = scmp.ne.s32.totalorder %s50, %s51
      %p62 = scmp.eq.s32.totalorder %s16, 0
      %p63 = por %p61, %p62
      %p64 = scmp.ne.s32.totalorder %s50, %s51
      %p65 = scmp.eq.s32.totalorder %s17, 1
      %p66 = por %p64, %p65
      %p68 = scmp.ne.s32.totalorder %s51, %s67
      %p69 = scmp.eq.s32.totalorder %s17, 0
      %p70 = por %p68, %p69
      %s72 = sadd.s32 %s71, 1
      %p75 = scmp.eq.s32.totalorder %s11, 1
      %p76 = scmp.ne.s32.totalorder %s71, %s73
      %p77 = scmp.eq.s32.totalorder %s11, 0
      %p78 = por %p76, %p77
      %p79 = scmp.ne.s32.totalorder %s71, %s73
      %p80 = scmp.eq.s32.totalorder %s16, 1
      %p81 = por %p79, %p80
      %p82 = scmp.ne.s32.totalorder %s73, %s74
      %p83 = scmp.eq.s32.totalorder %s16, 0
      %p84 = por %p82, %p83
      %p85 = scmp.ne.s32.totalorder %s73, %s74
      %p86 = scmp.eq.s32.totalorder %s17, 1
      %p87 = por %p85, %p86
      %p89 = scmp.ne.s32.totalorder %s74, %s88
      %p90 = scmp.eq.s32.totalorder %s17, 0
      %p91 = por %p89, %p90
      %s93 = sadd.s32 %s92, 1
      %p96 = scmp.eq.s32.totalorder %s11, 1
      %p97 = scmp.ne.s32.totalorder %s92, %s94
      %p98 = scmp.eq.s32.totalorder %s11, 0
      %p99 = por %p97, %p98
      %p100 = scmp.ne.s32.totalorder %s92, %s94
      %p101 = scmp.eq.s32.totalorder %s16, 1
      %p102 = por %p100, %p101
      %p103 = scmp.ne.s32.totalorder %s94, %s95
      %p104 = scmp.eq.s32.totalorder %s16, 0
      %p105 = por %p103, %p104
      %p106 = scmp.ne.s32.totalorder %s94, %s95
      %p107 = scmp.eq.s32.totalorder %s17, 1
      %p108 = por %p106, %p107
      %p110 = scmp.ne.s32.totalorder %s95, %s109
      %p111 = scmp.eq.s32.totalorder %s17, 0
      %p112 = por %p110, %p111
      %s113 = ssub.s32 %s11, %s18
      %p114 = scmp.eq.s32.totalorder %s113, 0
      %s116 = sadd.s32 %s115, 1
      %s117 = scalar_select %p114, %s115, %s116
      %p120 = pneg %p114
      %p121 = scmp.eq.s32.totalorder %s11, 1
      %p122 = por %p120, %p121
      %p123 = scmp.ne.s32.totalorder %s115, %s118
      %p124 = scmp.eq.s32.totalorder %s11, 0
      %p125 = por %p123, %p124
      %p126 = scmp.ne.s32.totalorder %s115, %s118
      %p127 = scmp.eq.s32.totalorder %s16, 1
      %p128 = por %p126, %p127
      %p129 = scmp.ne.s32.totalorder %s118, %s119
      %p130 = scmp.eq.s32.totalorder %s16, 0
      %p131 = por %p129, %p130
      %p132 = scmp.ne.s32.totalorder %s118, %s119
      %p133 = scmp.eq.s32.totalorder %s17, 1
      %p134 = por %p132, %p133
      %p136 = scmp.ne.s32.totalorder %s119, %s135
      %p137 = scmp.eq.s32.totalorder %s17, 0
      %p138 = por %p136, %p137
      %p139 = scmp.le.s32.totalorder 1, %s11
      %p140 = scmp.lt.s32.totalorder %s11, 3
      %p141 = pnand %p139, %p140
      %p142 = pneg %p141
      // Predicated region
      $region9: #{lstm_classifier_forward_batch.1} parent=5 // pred_check
        _
      $region10: #{lstm_classifier_forward_batch.1} parent=5 // pred_check_branch
        %144 = sbr.rel (%p141) target = $region12
      $region11: #{lstm_classifier_forward_batch.1} parent=5 // pred_region
        %s145 = ssub.s32 %s11, 1
        // Predicated region
        $region13: #{lstm_classifier_forward_batch.1} parent=11 // pred_check
          %p146 = pneg %p84
        $region14: #{lstm_classifier_forward_batch.1} parent=11 // pred_check_branch
          %148 = sbr.rel (%p146) target = $region16
        $region15: #{lstm_classifier_forward_batch.1} parent=11 // pred_region
          _
        $region16: #{lstm_classifier_forward_batch.1} parent=11 // pred_fallthru
          _
        // Predicated region
        $region17: #{lstm_classifier_forward_batch.1} parent=11 // pred_check
          %p149 = pneg %p105
        $region18: #{lstm_classifier_forward_batch.1} parent=11 // pred_check_branch
          %151 = sbr.rel (%p149) target = $region20
        $region19: #{lstm_classifier_forward_batch.1} parent=11 // pred_region
          %s153 = ssub.s32 18432, 18432
          %154 = vsyncadd [#allocation4], %s153
          %s155 = sshll.u32 [#allocation3], 4
          %s156 = int_to_ptr.vmem [resolvable:$true] %s155
          %161 = dma.hbm_to_vmem [thread:$0]  %s3, 18432, %s156, [#allocation4], 512, 512, 32
        $region20: #{lstm_classifier_forward_batch.1} parent=11 // pred_fallthru
          _
      $region12: #{lstm_classifier_forward_batch.1} parent=5 // pred_fallthru
        _
      %p162 = scmp.lt.s32.totalorder %s11, 2
      // Predicated region
      $region21: #{lstm_classifier_forward_batch.1} parent=5 // pred_check
        %p163 = pneg %p162
      $region22: #{lstm_classifier_forward_batch.1} parent=5 // pred_check_branch
        %165 = sbr.rel (%p163) target = $region24
      $region23: #{lstm_classifier_forward_batch.1} parent=5 // pred_region
        // Predicated region
        $region25: #{lstm_classifier_forward_batch.1} parent=23 // pred_check
          %p166 = pneg %p31
        $region26: #{lstm_classifier_forward_batch.1} parent=23 // pred_check_branch
          %168 = sbr.rel (%p166) target = $region28
        $region27: #{lstm_classifier_forward_batch.1} parent=23 // pred_region
          %s169 = smul.u32 8, %s11
          %p170 = scmp.lt.s32.totalorder %s169, 15
          %s171 = scalar_select %p170, %s169, 15
          %s172 = smul.addr %s171, 8
          %s173 = scalar_lea.vmem %s0, %s172
          %s174 = smul.u32 8, %s11
        $region28: #{lstm_classifier_forward_batch.1} parent=23 // pred_fallthru
          _
        // Predicated region
        $region29: #{lstm_classifier_forward_batch.1} parent=23 // pred_check
          %p175 = pneg %p57
        $region30: #{lstm_classifier_forward_batch.1} parent=23 // pred_check_branch
          %177 = sbr.rel (%p175) target = $region32
        $region31: #{lstm_classifier_forward_batch.1} parent=23 // pred_region
          %p178 = scmp.lt.s32.totalorder %s11, 1
          %s179 = scalar_select %p178, %s11, 1
          %s180 = smul.addr %s179, 8
          %s181 = scalar_lea.vmem %s1, %s180
        $region32: #{lstm_classifier_forward_batch.1} parent=23 // pred_fallthru
          _
      $region24: #{lstm_classifier_forward_batch.1} parent=5 // pred_fallthru
        _
      %p182 = scmp.le.s32.totalorder 1, %s11
      %p183 = scmp.lt.s32.totalorder %s11, 3
      %p184 = pnand %p182, %p183
      %p185 = pneg %p184
      // Predicated region
      $region33: #{lstm_classifier_forward_batch.1} parent=5 // pred_check
        _
      $region34: #{lstm_classifier_forward_batch.1} parent=5 // pred_check_branch
        %187 = sbr.rel (%p184) target = $region36
      $region35: #{lstm_classifier_forward_batch.1} parent=5 // pred_region
        %s188 = ssub.s32 %s11, 1
        // Predicated region
        $region37: #{lstm_classifier_forward_batch.1} parent=35 // pred_check
          %p189 = pneg %p105
        $region38: #{lstm_classifier_forward_batch.1} parent=35 // pred_check_branch
          %191 = sbr.rel (%p189) target = $region40
        $region39: #{lstm_classifier_forward_batch.1} parent=35 // pred_region
          %192 = dma.done [#allocation4], 18432
        $region40: #{lstm_classifier_forward_batch.1} parent=35 // pred_fallthru
          _
        %s193 = smul.u32 8, %s16
        %p194 = scmp.lt.s32.totalorder %s193, 15
        %s195 = scalar_select %p194, %s193, 15
        %s196 = smul.addr %s195, 8
        %s197 = scalar_lea.vmem %s0, %s196
        %p198 = pneg %p37
        %p199 = pneg %p34
        %p200 = scmp.lt.s32.totalorder %s16, 1
        %s201 = scalar_select %p200, %s16, 1
        %s202 = smul.addr %s201, 8
        %s203 = scalar_lea.vmem %s1, %s202
        %p204 = pneg %p63
        %p205 = pneg %p60
        %p206 = pneg %p84
        %p207 = pneg %p81
        %p208 = pneg %p105
        %p209 = pneg %p102
        %p210 = pneg %p131
        %p211 = pneg %p128
        %p212 = scmp.lt.s32.totalorder %s16, 1
        %s213 = scalar_select %p212, %s16, 1
        %s214 = smul.addr %s213, 8
        %s215 = scalar_lea.vmem %s4, %s214
        %s216 = smul.u32 8, %s16
        %p217 = scmp.lt.s32.totalorder %s216, 15
        %s218 = scalar_select %p217, %s216, 15
        %s219 = smul.addr %s218, 8
        %s220 = scalar_lea.vmem %s0, %s219
        %s221 = smul.u32 8, %s16
        %p222 = scmp.lt.s32.totalorder %s16, 1
        %s223 = scalar_select %p222, %s16, 1
        %s224 = smul.addr %s223, 8
        %s225 = scalar_lea.vmem %s1, %s224
        %p226 = scmp.lt.s32.totalorder %s16, 1
        %s227 = scalar_select %p226, %s16, 1
        %s228 = smul.addr %s227, 8
        %s229 = scalar_lea.vmem %s4, %s228
        %v230 = vld [vmem:[%s220] sm:$0xff]
        %v231 = vld [vmem:[%s220 + $0x8] sm:$0xff]
        %v232 = vld [vmem:[%s220 + $0x10] sm:$0xff]
        %v233 = vld [vmem:[%s220 + $0x18] sm:$0xff]
        %v234 = vld [vmem:[%s220 + $0x20] sm:$0xff]
        %v235 = vld [vmem:[%s220 + $0x28] sm:$0xff]
        %v236 = vld [vmem:[%s220 + $0x30] sm:$0xff]
        %v237 = vld [vmem:[%s220 + $0x38] sm:$0xff]
        %v238 = vlaneseq
        %v239 = vand.u32 %v238, 127
        %240 = vset.pattern.permute.xlu0 0
        %241 = vperm.xlu0 %240, %v230
        %v242 = vpop.permute.xlu0 %241
        %243 = vset.pattern.permute.xlu0 0
        %244 = vperm.xlu0 %243, %v231
        %v245 = vpop.permute.xlu0 %244
        %246 = vset.pattern.permute.xlu0 0
        %247 = vperm.xlu0 %246, %v232
        %v248 = vpop.permute.xlu0 %247
        %249 = vset.pattern.permute.xlu0 0
        %250 = vperm.xlu0 %249, %v233
        %v251 = vpop.permute.xlu0 %250
        %252 = vset.pattern.permute.xlu0 0
        %253 = vperm.xlu0 %252, %v234
        %v254 = vpop.permute.xlu0 %253
        %255 = vset.pattern.permute.xlu0 0
        %256 = vperm.xlu0 %255, %v235
        %v257 = vpop.permute.xlu0 %256
        %258 = vset.pattern.permute.xlu0 0
        %259 = vperm.xlu0 %258, %v236
        %v260 = vpop.permute.xlu0 %259
        %261 = vset.pattern.permute.xlu0 0
        %262 = vperm.xlu0 %261, %v237
        %v263 = vpop.permute.xlu0 %262
        %vm264 = vcmp.eq.s32.totalorder %v239, %v242
        %vm265 = vcmp.eq.s32.totalorder %v239, %v245
        %vm266 = vcmp.eq.s32.totalorder %v239, %v248
        %vm267 = vcmp.eq.s32.totalorder %v239, %v251
        %vm268 = vcmp.eq.s32.totalorder %v239, %v254
        %vm269 = vcmp.eq.s32.totalorder %v239, %v257
        %vm270 = vcmp.eq.s32.totalorder %v239, %v260
        %vm271 = vcmp.eq.s32.totalorder %v239, %v263
        %v272 = vsel %vm264, 1, 0
        %v273 = vsel %vm265, 1, 0
        %v274 = vsel %vm266, 1, 0
        %v275 = vsel %vm267, 1, 0
        %v276 = vsel %vm268, 1, 0
        %v277 = vsel %vm269, 1, 0
        %v278 = vsel %vm270, 1, 0
        %v279 = vsel %vm271, 1, 0
        %v280 = vcvt.s32.f32 %v272
        %v281 = vcvt.s32.f32 %v273
        %v282 = vcvt.s32.f32 %v274
        %v283 = vcvt.s32.f32 %v275
        %v284 = vcvt.s32.f32 %v276
        %v285 = vcvt.s32.f32 %v277
        %v286 = vcvt.s32.f32 %v278
        %v287 = vcvt.s32.f32 %v279
        %v288 = vld [vmem:[%s2] sm:$0xff]
        %v289 = vld [vmem:[%s2 + $0x8] sm:$0xff]
        %v290 = vld [vmem:[%s2 + $0x10] sm:$0xff]
        %v291 = vld [vmem:[%s2 + $0x18] sm:$0xff]
        %v292 = vld [vmem:[%s2 + $0x20] sm:$0xff]
        %v293 = vld [vmem:[%s2 + $0x28] sm:$0xff]
        %v294 = vld [vmem:[%s2 + $0x30] sm:$0x3]
        %vm295 = vcmask 408576
        %v297 = vsel %vm295, %v280, 0
        %v300 = vsel %vm295, %v281, 0
        %v303 = vsel %vm295, %v282, 0
        %v306 = vsel %vm295, %v283, 0
        %v309 = vsel %vm295, %v284, 0
        %v312 = vsel %vm295, %v285, 0
        %v315 = vsel %vm295, %v286, 0
        %v318 = vsel %vm295, %v287, 0
        %vm320 = vcmask 1041408
        %v322 = vsel %vm320, %v294, 0
        %324 = vmatprep.subr.mxu0 0.0
        %325 = vmatpush1.msra.mxu0 %v288
        %326 = vmatprep.subr.mxu0 0.0
        %327 = vmatpush1.msra.mxu0 %v289
        %328 = vmatprep.subr.mxu0 0.0
        %329 = vmatpush1.msra.mxu0 %v290
        %330 = vmatprep.subr.mxu0 0.0
        %331 = vmatpush1.msra.mxu0 %v291
        %332 = vmatprep.subr.mxu0 0.0
        %333 = vmatpush1.msra.mxu0 %v292
        %334 = vmatprep.subr.mxu0 0.0
        %335 = vmatpush1.msra.mxu0 %v293
        %336 = vmatprep.subr.mxu0 0.0
        %337 = vmatpush1.msra.mxu0 %v322
        %338 = vmatprep.subr.mxu0 0.0
        %339 = vmatpush1.msra.mxu0 0.0
        %340 = vmatprep.subr.mxu0 0.0
        %341 = vmatpush1.msra.mxu0 0.0
        %342 = vmatprep.subr.mxu0 0.0
        %343 = vmatpush1.msra.mxu0 0.0
        %344 = vmatprep.subr.mxu0 0.0
        %345 = vmatpush1.msra.mxu0 0.0
        %346 = vmatprep.subr.mxu0 0.0
        %347 = vmatpush1.msra.mxu0 0.0
        %348 = vmatprep.subr.mxu0 0.0
        %349 = vmatpush1.msra.mxu0 0.0
        %350 = vmatprep.subr.mxu0 0.0
        %351 = vmatpush1.msra.mxu0 0.0
        %352 = vmatprep.subr.mxu0 0.0
        %353 = vmatpush1.msra.mxu0 0.0
        %354 = vmatprep.subr.mxu0 0.0
        %355 = vmatpush1.msra.mxu0 0.0
        %356 = vmatprep.subr.mxu0 0.0
        %357 = vmatpush1.msra.mxu0 0.0
        %358 = vmatprep.subr.mxu0 0.0
        %359 = vmatpush1.msra.mxu0 0.0
        %360 = vmatprep.subr.mxu0 0.0
        %361 = vmatpush1.msra.mxu0 0.0
        %362 = vmatprep.subr.mxu0 0.0
        %363 = vmatpush1.msra.mxu0 0.0
        %364 = vmatprep.subr.mxu0 0.0
        %365 = vmatpush1.msra.mxu0 0.0
        %366 = vmatprep.subr.mxu0 0.0
        %367 = vmatpush1.msra.mxu0 0.0
        %368 = vmatprep.subr.mxu0 0.0
        %369 = vmatpush1.msra.mxu0 0.0
        %370 = vmatprep.subr.mxu0 0.0
        %371 = vmatpush1.msra.mxu0 0.0
        %372 = vmatprep.subr.mxu0 0.0
        %373 = vmatpush1.msra.mxu0 0.0
        %374 = vmatprep.subr.mxu0 0.0
        %375 = vmatpush1.msra.mxu0 0.0
        %376 = vmatprep.subr.mxu0 0.0
        %377 = vmatpush1.msra.mxu0 0.0
        %378 = vmatprep.subr.mxu0 0.0
        %379 = vmatpush1.msra.mxu0 0.0
        %380 = vmatprep.subr.mxu0 0.0
        %381 = vmatpush1.msra.mxu0 0.0
        %382 = vmatprep.subr.mxu0 0.0
        %383 = vmatpush1.msra.mxu0 0.0
        %384 = vmatprep.subr.mxu0 0.0
        %385 = vmatpush1.msra.mxu0 0.0
        %386 = vmatprep.subr.mxu0 0.0
        %387 = vmatpush1.msra.mxu0 0.0
        %388 = vmatprep.mubr.f32.mxu0 0.0
        %389 = vmatmul.mubr.f32.gmra.mrb[0].mxu0 %v297
        %v390 = vpop.f32.mrb[0].mxu0
        %v391 = vadd.f32 0.0, %v390
        %v392 = vpop.f32.mrb[0].mxu0
        %393 = vmatprep.mubr.f32.mxu0 0.0
        %394 = vmatmul.mubr.f32.gmra.mrb[0].mxu0 %v300
        %v395 = vpop.f32.mrb[0].mxu0
        %v396 = vadd.f32 0.0, %v395
        %v397 = vpop.f32.mrb[0].mxu0
        %398 = vmatprep.mubr.f32.mxu0 0.0
        %399 = vmatmul.mubr.f32.gmra.mrb[0].mxu0 %v303
        %v400 = vpop.f32.mrb[0].mxu0
        %v401 = vadd.f32 0.0, %v400
        %v402 = vpop.f32.mrb[0].mxu0
        %403 = vmatprep.mubr.f32.mxu0 0.0
        %404 = vmatmul.mubr.f32.gmra.mrb[0].mxu0 %v306
        %v405 = vpop.f32.mrb[0].mxu0
        %v406 = vadd.f32 0.0, %v405
        %v407 = vpop.f32.mrb[0].mxu0
        %408 = vmatprep.mubr.f32.mxu0 0.0
        %409 = vmatmul.mubr.f32.gmra.mrb[0].mxu0 %v309
        %v410 = vpop.f32.mrb[0].mxu0
        %v411 = vadd.f32 0.0, %v410
        %v412 = vpop.f32.mrb[0].mxu0
        %413 = vmatprep.mubr.f32.mxu0 0.0
        %414 = vmatmul.mubr.f32.gmra.mrb[0].mxu0 %v312
        %v415 = vpop.f32.mrb[0].mxu0
        %v416 = vadd.f32 0.0, %v415
        %v417 = vpop.f32.mrb[0].mxu0
        %418 = vmatprep.mubr.f32.mxu0 0.0
        %419 = vmatmul.mubr.f32.gmra.mrb[0].mxu0 %v315
        %v420 = vpop.f32.mrb[0].mxu0
        %v421 = vadd.f32 0.0, %v420
        %v422 = vpop.f32.mrb[0].mxu0
        %423 = vmatprep.mubr.f32.mxu0 0.0
        %424 = vmatmul.mubr.f32.gmra.mrb[0].mxu0 %v318
        %v425 = vpop.f32.mrb[0].mxu0
        %v426 = vadd.f32 0.0, %v425
        %v427 = vpop.f32.mrb[0].mxu0
        %428 = vdwg.mxu0
        %v429 = vld [vmem:[#allocation3] sm:$0xff]
        %v430 = vld [vmem:[#allocation3 + $0x8] sm:$0xff]
        %v431 = vld [vmem:[#allocation3 + $0x10] sm:$0xff]
        %v432 = vld [vmem:[#allocation3 + $0x18] sm:$0xff]
        %v433 = vld [vmem:[#allocation3 + $0x20] sm:$0xff]
        %v434 = vld [vmem:[#allocation3 + $0x28] sm:$0xff]
        %v435 = vld [vmem:[#allocation3 + $0x30] sm:$0xff]
        %v436 = vld [vmem:[#allocation3 + $0x38] sm:$0xff]
        %s437 = scalar_lea.vmem [#allocation3], 576
        %v438 = vld [vmem:[%s437] ss:$8 sm:$0xf]
        %v440 = vlaneseq
        %v441 = vshrl.u32 %v440, 7
        %v442 = vsub.s32 0, %v441
        %v443 = vrot.slane %v438, %v442
        %v444 = vlaneseq
        %v445 = vshrl.u32 %v444, 7
        %v446 = vsub.s32 1, %v445
        %v447 = vrot.slane %v438, %v446
        %v448 = vlaneseq
        %v449 = vshrl.u32 %v448, 7
        %v450 = vsub.s32 2, %v449
        %v451 = vrot.slane %v438, %v450
        %v452 = vlaneseq
        %v453 = vshrl.u32 %v452, 7
        %v454 = vsub.s32 3, %v453
        %v455 = vrot.slane %v438, %v454
        %vm460 = vcmask 130048
        %v462 = vsel %vm460, %v391, 0
        %v465 = vsel %vm460, %v396, 0
        %v468 = vsel %vm460, %v401, 0
        %v471 = vsel %vm460, %v406, 0
        %v474 = vsel %vm460, %v411, 0
        %v477 = vsel %vm460, %v416, 0
        %v480 = vsel %vm460, %v421, 0
        %v483 = vsel %vm460, %v426, 0
        %485 = vmatprep.subr.mxu0 %v430
        %486 = vmatpush1.msra.mxu0 %v429
        %487 = vmatprep.subr.mxu0 %v434
        %488 = vmatpush1.msra.mxu0 %v433
        %489 = vmatprep.subr.mxu0 0.0
        %490 = vmatpush1.msra.mxu0 0.0
        %491 = vmatprep.subr.mxu0 0.0
        %492 = vmatpush1.msra.mxu0 0.0
        %493 = vmatprep.subr.mxu0 0.0
        %494 = vmatpush1.msra.mxu0 0.0
        %495 = vmatprep.subr.mxu0 0.0
        %496 = vmatpush1.msra.mxu0 0.0
        %497 = vmatprep.subr.mxu0 0.0
        %498 = vmatpush1.msra.mxu0 0.0
        %499 = vmatprep.subr.mxu0 0.0
        %500 = vmatpush1.msra.mxu0 0.0
        %501 = vmatprep.subr.mxu0 0.0
        %502 = vmatpush1.msra.mxu0 0.0
        %503 = vmatprep.subr.mxu0 0.0
        %504 = vmatpush1.msra.mxu0 0.0
        %505 = vmatprep.subr.mxu0 0.0
        %506 = vmatpush1.msra.mxu0 0.0
        %507 = vmatprep.subr.mxu0 0.0
        %508 = vmatpush1.msra.mxu0 0.0
        %509 = vmatprep.subr.mxu0 0.0
        %510 = vmatpush1.msra.mxu0 0.0
        %511 = vmatprep.subr.mxu0 0.0
        %512 = vmatpush1.msra.mxu0 0.0
        %513 = vmatprep.subr.mxu0 0.0
        %514 = vmatpush1.msra.mxu0 0.0
        %515 = vmatprep.subr.mxu0 0.0
        %516 = vmatpush1.msra.mxu0 0.0
        %517 = vmatprep.subr.mxu0 0.0
        %518 = vmatpush1.msra.mxu0 0.0
        %519 = vmatprep.subr.mxu0 0.0
        %520 = vmatpush1.msra.mxu0 0.0
        %521 = vmatprep.subr.mxu0 0.0
        %522 = vmatpush1.msra.mxu0 0.0
        %523 = vmatprep.subr.mxu0 0.0
        %524 = vmatpush1.msra.mxu0 0.0
        %525 = vmatprep.subr.mxu0 0.0
        %526 = vmatpush1.msra.mxu0 0.0
        %527 = vmatprep.subr.mxu0 0.0
        %528 = vmatpush1.msra.mxu0 0.0
        %529 = vmatprep.subr.mxu0 0.0
        %530 = vmatpush1.msra.mxu0 0.0
        %531 = vmatprep.subr.mxu0 0.0
        %532 = vmatpush1.msra.mxu0 0.0
        %533 = vmatprep.subr.mxu0 0.0
        %534 = vmatpush1.msra.mxu0 0.0
        %535 = vmatprep.subr.mxu0 0.0
        %536 = vmatpush1.msra.mxu0 0.0
        %537 = vmatprep.subr.mxu0 0.0
        %538 = vmatpush1.msra.mxu0 0.0
        %539 = vmatprep.subr.mxu0 0.0
        %540 = vmatpush1.msra.mxu0 0.0
        %541 = vmatprep.subr.mxu0 0.0
        %542 = vmatpush1.msra.mxu0 0.0
        %543 = vmatprep.subr.mxu0 0.0
        %544 = vmatpush1.msra.mxu0 0.0
        %545 = vmatprep.subr.mxu0 0.0
        %546 = vmatpush1.msra.mxu0 0.0
        %547 = vmatprep.subr.mxu0 0.0
        %548 = vmatpush1.msra.mxu0 0.0
        %549 = vmatprep.mubr.f32.mxu0 0.0
        %550 = vmatmul.mubr.f32.gmra.mrb[0].mxu0 %v462
        %v551 = vpop.f32.mrb[0].mxu0
        %v552 = vadd.f32 %v443, %v551
        %v553 = vpop.f32.mrb[0].mxu0
        %v554 = vadd.f32 %v447, %v553
        %555 = vmatprep.mubr.f32.mxu0 0.0
        %556 = vmatmul.mubr.f32.gmra.mrb[0].mxu0 %v465
        %v557 = vpop.f32.mrb[0].mxu0
        %v558 = vadd.f32 %v443, %v557
        %v559 = vpop.f32.mrb[0].mxu0
        %v560 = vadd.f32 %v447, %v559
        %561 = vmatprep.mubr.f32.mxu0 0.0
        %562 = vmatmul.mubr.f32.gmra.mrb[0].mxu0 %v468
        %v563 = vpop.f32.mrb[0].mxu0
        %v564 = vadd.f32 %v443, %v563
        %v565 = vpop.f32.mrb[0].mxu0
        %v566 = vadd.f32 %v447, %v565
        %567 = vmatprep.mubr.f32.mxu0 0.0
        %568 = vmatmul.mubr.f32.gmra.mrb[0].mxu0 %v471
        %v569 = vpop.f32.mrb[0].mxu0
        %v570 = vadd.f32 %v443, %v569
        %v571 = vpop.f32.mrb[0].mxu0
        %v572 = vadd.f32 %v447, %v571
        %573 = vmatprep.mubr.f32.mxu0 0.0
        %574 = vmatmul.mubr.f32.gmra.mrb[0].mxu0 %v474
        %v575 = vpop.f32.mrb[0].mxu0
        %v576 = vadd.f32 %v443, %v575
        %v577 = vpop.f32.mrb[0].mxu0
        %v578 = vadd.f32 %v447, %v577
        %579 = vmatprep.mubr.f32.mxu0 0.0
        %580 = vmatmul.mubr.f32.gmra.mrb[0].mxu0 %v477
        %v581 = vpop.f32.mrb[0].mxu0
        %v582 = vadd.f32 %v443, %v581
        %v583 = vpop.f32.mrb[0].mxu0
        %v584 = vadd.f32 %v447, %v583
        %585 = vmatprep.mubr.f32.mxu0 0.0
        %586 = vmatmul.mubr.f32.gmra.mrb[0].mxu0 %v480
        %v587 = vpop.f32.mrb[0].mxu0
        %v588 = vadd.f32 %v443, %v587
        %v589 = vpop.f32.mrb[0].mxu0
        %v590 = vadd.f32 %v447, %v589
        %591 = vmatprep.mubr.f32.mxu0 0.0
        %592 = vmatmul.mubr.f32.gmra.mrb[0].mxu0 %v483
        %v593 = vpop.f32.mrb[0].mxu0
        %v594 = vadd.f32 %v443, %v593
        %v595 = vpop.f32.mrb[0].mxu0
        %v596 = vadd.f32 %v447, %v595
        %597 = vdwg.mxu0
        %598 = vmatprep.subr.mxu0 %v432
        %599 = vmatpush1.msra.mxu0 %v431
        %600 = vmatprep.subr.mxu0 %v436
        %601 = vmatpush1.msra.mxu0 %v435
        %602 = vmatprep.subr.mxu0 0.0
        %603 = vmatpush1.msra.mxu0 0.0
        %604 = vmatprep.subr.mxu0 0.0
        %605 = vmatpush1.msra.mxu0 0.0
        %606 = vmatprep.subr.mxu0 0.0
        %607 = vmatpush1.msra.mxu0 0.0
        %608 = vmatprep.subr.mxu0 0.0
        %609 = vmatpush1.msra.mxu0 0.0
        %610 = vmatprep.subr.mxu0 0.0
        %611 = vmatpush1.msra.mxu0 0.0
        %612 = vmatprep.subr.mxu0 0.0
        %613 = vmatpush1.msra.mxu0 0.0
        %614 = vmatprep.subr.mxu0 0.0
        %615 = vmatpush1.msra.mxu0 0.0
        %616 = vmatprep.subr.mxu0 0.0
        %617 = vmatpush1.msra.mxu0 0.0
        %618 = vmatprep.subr.mxu0 0.0
        %619 = vmatpush1.msra.mxu0 0.0
        %620 = vmatprep.subr.mxu0 0.0
        %621 = vmatpush1.msra.mxu0 0.0
        %622 = vmatprep.subr.mxu0 0.0
        %623 = vmatpush1.msra.mxu0 0.0
        %624 = vmatprep.subr.mxu0 0.0
        %625 = vmatpush1.msra.mxu0 0.0
        %626 = vmatprep.subr.mxu0 0.0
        %627 = vmatpush1.msra.mxu0 0.0
        %628 = vmatprep.subr.mxu0 0.0
        %629 = vmatpush1.msra.mxu0 0.0
        %630 = vmatprep.subr.mxu0 0.0
        %631 = vmatpush1.msra.mxu0 0.0
        %632 = vmatprep.subr.mxu0 0.0
        %633 = vmatpush1.msra.mxu0 0.0
        %634 = vmatprep.subr.mxu0 0.0
        %635 = vmatpush1.msra.mxu0 0.0
        %636 = vmatprep.subr.mxu0 0.0
        %637 = vmatpush1.msra.mxu0 0.0
        %638 = vmatprep.subr.mxu0 0.0
        %639 = vmatpush1.msra.mxu0 0.0
        %640 = vmatprep.subr.mxu0 0.0
        %641 = vmatpush1.msra.mxu0 0.0
        %642 = vmatprep.subr.mxu0 0.0
        %643 = vmatpush1.msra.mxu0 0.0
        %644 = vmatprep.subr.mxu0 0.0
        %645 = vmatpush1.msra.mxu0 0.0
        %646 = vmatprep.subr.mxu0 0.0
        %647 = vmatpush1.msra.mxu0 0.0
        %648 = vmatprep.subr.mxu0 0.0
        %649 = vmatpush1.msra.mxu0 0.0
        %650 = vmatprep.subr.mxu0 0.0
        %651 = vmatpush1.msra.mxu0 0.0
        %652 = vmatprep.subr.mxu0 0.0
        %653 = vmatpush1.msra.mxu0 0.0
        %654 = vmatprep.subr.mxu0 0.0
        %655 = vmatpush1.msra.mxu0 0.0
        %656 = vmatprep.subr.mxu0 0.0
        %657 = vmatpush1.msra.mxu0 0.0
        %658 = vmatprep.subr.mxu0 0.0
        %659 = vmatpush1.msra.mxu0 0.0
        %660 = vmatprep.subr.mxu0 0.0
        %661 = vmatpush1.msra.mxu0 0.0
        %662 = vmatprep.mubr.f32.mxu0 0.0
        %663 = vmatmul.mubr.f32.gmra.mrb[0].mxu0 %v462
        %v664 = vpop.f32.mrb[0].mxu0
        %v665 = vadd.f32 %v451, %v664
        %v666 = vpop.f32.mrb[0].mxu0
        %v667 = vadd.f32 %v455, %v666
        %668 = vmatprep.mubr.f32.mxu0 0.0
        %669 = vmatmul.mubr.f32.gmra.mrb[0].mxu0 %v465
        %v670 = vpop.f32.mrb[0].mxu0
        %v671 = vadd.f32 %v451, %v670
        %v672 = vpop.f32.mrb[0].mxu0
        %v673 = vadd.f32 %v455, %v672
        %674 = vmatprep.mubr.f32.mxu0 0.0
        %675 = vmatmul.mubr.f32.gmra.mrb[0].mxu0 %v468
        %v676 = vpop.f32.mrb[0].mxu0
        %v677 = vadd.f32 %v451, %v676
        %v678 = vpop.f32.mrb[0].mxu0
        %v679 = vadd.f32 %v455, %v678
        %680 = vmatprep.mubr.f32.mxu0 0.0
        %681 = vmatmul.mubr.f32.gmra.mrb[0].mxu0 %v471
        %v682 = vpop.f32.mrb[0].mxu0
        %v683 = vadd.f32 %v451, %v682
        %v684 = vpop.f32.mrb[0].mxu0
        %v685 = vadd.f32 %v455, %v684
        %686 = vmatprep.mubr.f32.mxu0 0.0
        %687 = vmatmul.mubr.f32.gmra.mrb[0].mxu0 %v474
        %v688 = vpop.f32.mrb[0].mxu0
        %v689 = vadd.f32 %v451, %v688
        %v690 = vpop.f32.mrb[0].mxu0
        %v691 = vadd.f32 %v455, %v690
        %692 = vmatprep.mubr.f32.mxu0 0.0
        %693 = vmatmul.mubr.f32.gmra.mrb[0].mxu0 %v477
        %v694 = vpop.f32.mrb[0].mxu0
        %v695 = vadd.f32 %v451, %v694
        %v696 = vpop.f32.mrb[0].mxu0
        %v697 = vadd.f32 %v455, %v696
        %698 = vmatprep.mubr.f32.mxu0 0.0
        %699 = vmatmul.mubr.f32.gmra.mrb[0].mxu0 %v480
        %v700 = vpop.f32.mrb[0].mxu0
        %v701 = vadd.f32 %v451, %v700
        %v702 = vpop.f32.mrb[0].mxu0
        %v703 = vadd.f32 %v455, %v702
        %704 = vmatprep.mubr.f32.mxu0 0.0
        %705 = vmatmul.mubr.f32.gmra.mrb[0].mxu0 %v483
        %v706 = vpop.f32.mrb[0].mxu0
        %v707 = vadd.f32 %v451, %v706
        %v708 = vpop.f32.mrb[0].mxu0
        %v709 = vadd.f32 %v455, %v708
        %710 = vdwg.mxu0
        %711 = vst [vmem:[#allocation2] sm:$0xff] %v552
        %712 = vst [vmem:[#allocation2 + $0x8] sm:$0xff] %v554
        %713 = vst [vmem:[#allocation2 + $0x10] sm:$0xff] %v665
        %714 = vst [vmem:[#allocation2 + $0x18] sm:$0xff] %v667
        %715 = vst [vmem:[#allocation2 + $0x20] sm:$0xff] %v558
        %716 = vst [vmem:[#allocation2 + $0x28] sm:$0xff] %v560
        %717 = vst [vmem:[#allocation2 + $0x30] sm:$0xff] %v671
        %718 = vst [vmem:[#allocation2 + $0x38] sm:$0xff] %v673
        %719 = vst [vmem:[#allocation2 + $0x40] sm:$0xff] %v564
        %720 = vst [vmem:[#allocation2 + $0x48] sm:$0xff] %v566
        %721 = vst [vmem:[#allocation2 + $0x50] sm:$0xff] %v677
        %722 = vst [vmem:[#allocation2 + $0x58] sm:$0xff] %v679
        %723 = vst [vmem:[#allocation2 + $0x60] sm:$0xff] %v570
        %724 = vst [vmem:[#allocation2 + $0x68] sm:$0xff] %v572
        %725 = vst [vmem:[#allocation2 + $0x70] sm:$0xff] %v683
        %726 = vst [vmem:[#allocation2 + $0x78] sm:$0xff] %v685
        %727 = vst [vmem:[#allocation2 + $0x80] sm:$0xff] %v576
        %728 = vst [vmem:[#allocation2 + $0x88] sm:$0xff] %v578
        %729 = vst [vmem:[#allocation2 + $0x90] sm:$0xff] %v689
        %730 = vst [vmem:[#allocation2 + $0x98] sm:$0xff] %v691
        %731 = vst [vmem:[#allocation2 + $0xa0] sm:$0xff] %v582
        %732 = vst [vmem:[#allocation2 + $0xa8] sm:$0xff] %v584
        %733 = vst [vmem:[#allocation2 + $0xb0] sm:$0xff] %v695
        %734 = vst [vmem:[#allocation2 + $0xb8] sm:$0xff] %v697
        %735 = vst [vmem:[#allocation2 + $0xc0] sm:$0xff] %v588
        %736 = vst [vmem:[#allocation2 + $0xc8] sm:$0xff] %v590
        %737 = vst [vmem:[#allocation2 + $0xd0] sm:$0xff] %v701
        %738 = vst [vmem:[#allocation2 + $0xd8] sm:$0xff] %v703
        %739 = vst [vmem:[#allocation2 + $0xe0] sm:$0xff] %v594
        %740 = vst [vmem:[#allocation2 + $0xe8] sm:$0xff] %v596
        %741 = vst [vmem:[#allocation2 + $0xf0] sm:$0xff] %v707
        %742 = vst [vmem:[#allocation2 + $0xf8] sm:$0xff] %v709
        %v743 = vld [vmem:[#allocation3 + $0x40] sm:$0xff]
        %v744 = vld [vmem:[#allocation3 + $0x48] sm:$0xff]
        %v745 = vld [vmem:[#allocation3 + $0x50] sm:$0xff]
        %v746 = vld [vmem:[#allocation3 + $0x58] sm:$0xff]
        %v747 = vld [vmem:[#allocation3 + $0x60] sm:$0xff]
        %v748 = vld [vmem:[#allocation3 + $0x68] sm:$0xff]
        %v749 = vld [vmem:[#allocation3 + $0x70] sm:$0xff]
        %v750 = vld [vmem:[#allocation3 + $0x78] sm:$0xff]
        %v751 = vld [vmem:[#allocation3 + $0x80] sm:$0xff]
        %v752 = vld [vmem:[#allocation3 + $0x88] sm:$0xff]
        %v753 = vld [vmem:[#allocation3 + $0x90] sm:$0xff]
        %v754 = vld [vmem:[#allocation3 + $0x98] sm:$0xff]
        %v755 = vld [vmem:[#allocation3 + $0xa0] sm:$0xff]
        %v756 = vld [vmem:[#allocation3 + $0xa8] sm:$0xff]
        %v757 = vld [vmem:[#allocation3 + $0xb0] sm:$0xff]
        %v758 = vld [vmem:[#allocation3 + $0xb8] sm:$0xff]
        %v759 = vld [vmem:[#allocation3 + $0xc0] sm:$0xff]
        %v760 = vld [vmem:[#allocation3 + $0xc8] sm:$0xff]
        %v761 = vld [vmem:[#allocation3 + $0xd0] sm:$0xff]
        %v762 = vld [vmem:[#allocation3 + $0xd8] sm:$0xff]
        %v763 = vld [vmem:[#allocation3 + $0xe0] sm:$0xff]
        %v764 = vld [vmem:[#allocation3 + $0xe8] sm:$0xff]
        %v765 = vld [vmem:[#allocation3 + $0xf0] sm:$0xff]
        %v766 = vld [vmem:[#allocation3 + $0xf8] sm:$0xff]
        %v767 = vld [vmem:[#allocation3 + $0x100] sm:$0xff]
        %v768 = vld [vmem:[#allocation3 + $0x108] sm:$0xff]
        %v769 = vld [vmem:[#allocation3 + $0x110] sm:$0xff]
        %v770 = vld [vmem:[#allocation3 + $0x118] sm:$0xff]
        %v771 = vld [vmem:[#allocation3 + $0x120] sm:$0xff]
        %v772 = vld [vmem:[#allocation3 + $0x128] sm:$0xff]
        %v773 = vld [vmem:[#allocation3 + $0x130] sm:$0xff]
        %v774 = vld [vmem:[#allocation3 + $0x138] sm:$0xff]
        %v775 = vld [vmem:[#allocation3 + $0x140] sm:$0xff]
        %v776 = vld [vmem:[#allocation3 + $0x148] sm:$0xff]
        %v777 = vld [vmem:[#allocation3 + $0x150] sm:$0xff]
        %v778 = vld [vmem:[#allocation3 + $0x158] sm:$0xff]
        %v779 = vld [vmem:[#allocation3 + $0x160] sm:$0xff]
        %v780 = vld [vmem:[#allocation3 + $0x168] sm:$0xff]
        %v781 = vld [vmem:[#allocation3 + $0x170] sm:$0xff]
        %v782 = vld [vmem:[#allocation3 + $0x178] sm:$0xff]
        %v783 = vld [vmem:[#allocation3 + $0x180] sm:$0xff]
        %v784 = vld [vmem:[#allocation3 + $0x188] sm:$0xff]
        %v785 = vld [vmem:[#allocation3 + $0x190] sm:$0xff]
        %v786 = vld [vmem:[#allocation3 + $0x198] sm:$0xff]
        %v787 = vld [vmem:[#allocation3 + $0x1a0] sm:$0xff]
        %v788 = vld [vmem:[#allocation3 + $0x1a8] sm:$0xff]
        %v789 = vld [vmem:[#allocation3 + $0x1b0] sm:$0xff]
        %v790 = vld [vmem:[#allocation3 + $0x1b8] sm:$0xff]
        %v791 = vld [vmem:[#allocation3 + $0x1c0] sm:$0xff]
        %v792 = vld [vmem:[#allocation3 + $0x1c8] sm:$0xff]
        %v793 = vld [vmem:[#allocation3 + $0x1d0] sm:$0xff]
        %v794 = vld [vmem:[#allocation3 + $0x1d8] sm:$0xff]
        %v795 = vld [vmem:[#allocation3 + $0x1e0] sm:$0xff]
        %v796 = vld [vmem:[#allocation3 + $0x1e8] sm:$0xff]
        %v797 = vld [vmem:[#allocation3 + $0x1f0] sm:$0xff]
        %v798 = vld [vmem:[#allocation3 + $0x1f8] sm:$0xff]
        %v799 = vld [vmem:[#allocation3 + $0x200] sm:$0xff]
        %v800 = vld [vmem:[#allocation3 + $0x208] sm:$0xff]
        %v801 = vld [vmem:[#allocation3 + $0x210] sm:$0xff]
        %v802 = vld [vmem:[#allocation3 + $0x218] sm:$0xff]
        %v803 = vld [vmem:[#allocation3 + $0x220] sm:$0xff]
        %v804 = vld [vmem:[#allocation3 + $0x228] sm:$0xff]
        %v805 = vld [vmem:[#allocation3 + $0x230] sm:$0xff]
        %v806 = vld [vmem:[#allocation3 + $0x238] sm:$0xff]
        %v807 = vld [vmem:[%s225] sm:$0xff]
        %v808 = vld [vmem:[#allocation2] sm:$0xff]
        %v809 = vld [vmem:[#allocation2 + $0x8] sm:$0xff]
        %v810 = vld [vmem:[#allocation2 + $0x10] sm:$0xff]
        %v811 = vld [vmem:[#allocation2 + $0x18] sm:$0xff]
        %812 = vmatprep.subr.mxu0 %v744
        %813 = vmatpush1.msra.mxu0 %v743
        %814 = vmatprep.subr.mxu0 %v748
        %815 = vmatpush1.msra.mxu0 %v747
        %816 = vmatprep.subr.mxu0 %v752
        %817 = vmatpush1.msra.mxu0 %v751
        %818 = vmatprep.subr.mxu0 %v756
        %819 = vmatpush1.msra.mxu0 %v755
        %820 = vmatprep.subr.mxu0 %v760
        %821 = vmatpush1.msra.mxu0 %v759
        %822 = vmatprep.subr.mxu0 %v764
        %823 = vmatpush1.msra.mxu0 %v763
        %824 = vmatprep.subr.mxu0 %v768
        %825 = vmatpush1.msra.mxu0 %v767
        %826 = vmatprep.subr.mxu0 %v772
        %827 = vmatpush1.msra.mxu0 %v771
        %828 = vmatprep.subr.mxu0 %v776
        %829 = vmatpush1.msra.mxu0 %v775
        %830 = vmatprep.subr.mxu0 %v780
        %831 = vmatpush1.msra.mxu0 %v779
        %832 = vmatprep.subr.mxu0 %v784
        %833 = vmatpush1.msra.mxu0 %v783
        %834 = vmatprep.subr.mxu0 %v788
        %835 = vmatpush1.msra.mxu0 %v787
        %836 = vmatprep.subr.mxu0 %v792
        %837 = vmatpush1.msra.mxu0 %v791
        %838 = vmatprep.subr.mxu0 %v796
        %839 = vmatpush1.msra.mxu0 %v795
        %840 = vmatprep.subr.mxu0 %v800
        %841 = vmatpush1.msra.mxu0 %v799
        %842 = vmatprep.subr.mxu0 %v804
        %843 = vmatpush1.msra.mxu0 %v803
        %844 = vmatprep.subr.mxu0 0.0
        %845 = vmatpush1.msra.mxu0 0.0
        %846 = vmatprep.subr.mxu0 0.0
        %847 = vmatpush1.msra.mxu0 0.0
        %848 = vmatprep.subr.mxu0 0.0
        %849 = vmatpush1.msra.mxu0 0.0
        %850 = vmatprep.subr.mxu0 0.0
        %851 = vmatpush1.msra.mxu0 0.0
        %852 = vmatprep.subr.mxu0 0.0
        %853 = vmatpush1.msra.mxu0 0.0
        %854 = vmatprep.subr.mxu0 0.0
        %855 = vmatpush1.msra.mxu0 0.0
        %856 = vmatprep.subr.mxu0 0.0
        %857 = vmatpush1.msra.mxu0 0.0
        %858 = vmatprep.subr.mxu0 0.0
        %859 = vmatpush1.msra.mxu0 0.0
        %860 = vmatprep.subr.mxu0 0.0
        %861 = vmatpush1.msra.mxu0 0.0
        %862 = vmatprep.subr.mxu0 0.0
        %863 = vmatpush1.msra.mxu0 0.0
        %864 = vmatprep.subr.mxu0 0.0
        %865 = vmatpush1.msra.mxu0 0.0
        %866 = vmatprep.subr.mxu0 0.0
        %867 = vmatpush1.msra.mxu0 0.0
        %868 = vmatprep.subr.mxu0 0.0
        %869 = vmatpush1.msra.mxu0 0.0
        %870 = vmatprep.subr.mxu0 0.0
        %871 = vmatpush1.msra.mxu0 0.0
        %872 = vmatprep.subr.mxu0 0.0
        %873 = vmatpush1.msra.mxu0 0.0
        %874 = vmatprep.subr.mxu0 0.0
        %875 = vmatpush1.msra.mxu0 0.0
        %876 = vmatprep.mubr.f32.mxu0 0.0
        %877 = vmatmul.mubr.f32.gmra.mrb[0].mxu0 0.0
        %v878 = vpop.f32.mrb[0].mxu0
        %v879 = vadd.f32 0.0, %v878
        %v880 = vpop.f32.mrb[0].mxu0
        %v881 = vadd.f32 0.0, %v880
        %882 = vdwg.mxu0
        %883 = vmatprep.subr.mxu0 %v746
        %884 = vmatpush1.msra.mxu0 %v745
        %885 = vmatprep.subr.mxu0 %v750
        %886 = vmatpush1.msra.mxu0 %v749
        %887 = vmatprep.subr.mxu0 %v754
        %888 = vmatpush1.msra.mxu0 %v753
        %889 = vmatprep.subr.mxu0 %v758
        %890 = vmatpush1.msra.mxu0 %v757
        %891 = vmatprep.subr.mxu0 %v762
        %892 = vmatpush1.msra.mxu0 %v761
        %893 = vmatprep.subr.mxu0 %v766
        %894 = vmatpush1.msra.mxu0 %v765
        %895 = vmatprep.subr.mxu0 %v770
        %896 = vmatpush1.msra.mxu0 %v769
        %897 = vmatprep.subr.mxu0 %v774
        %898 = vmatpush1.msra.mxu0 %v773
        %899 = vmatprep.subr.mxu0 %v778
        %900 = vmatpush1.msra.mxu0 %v777
        %901 = vmatprep.subr.mxu0 %v782
        %902 = vmatpush1.msra.mxu0 %v781
        %903 = vmatprep.subr.mxu0 %v786
        %904 = vmatpush1.msra.mxu0 %v785
        %905 = vmatprep.subr.mxu0 %v790
        %906 = vmatpush1.msra.mxu0 %v789
        %907 = vmatprep.subr.mxu0 %v794
        %908 = vmatpush1.msra.mxu0 %v793
        %909 = vmatprep.subr.mxu0 %v798
        %910 = vmatpush1.msra.mxu0 %v797
        %911 = vmatprep.subr.mxu0 %v802
        %912 = vmatpush1.msra.mxu0 %v801
        %913 = vmatprep.subr.mxu0 %v806
        %914 = vmatpush1.msra.mxu0 %v805
        %915 = vmatprep.subr.mxu0 0.0
        %916 = vmatpush1.msra.mxu0 0.0
        %917 = vmatprep.subr.mxu0 0.0
        %918 = vmatpush1.msra.mxu0 0.0
        %919 = vmatprep.subr.mxu0 0.0
        %920 = vmatpush1.msra.mxu0 0.0
        %921 = vmatprep.subr.mxu0 0.0
        %922 = vmatpush1.msra.mxu0 0.0
        %923 = vmatprep.subr.mxu0 0.0
        %924 = vmatpush1.msra.mxu0 0.0
        %925 = vmatprep.subr.mxu0 0.0
        %926 = vmatpush1.msra.mxu0 0.0
        %927 = vmatprep.subr.mxu0 0.0
        %928 = vmatpush1.msra.mxu0 0.0
        %929 = vmatprep.subr.mxu0 0.0
        %930 = vmatpush1.msra.mxu0 0.0
        %931 = vmatprep.subr.mxu0 0.0
        %932 = vmatpush1.msra.mxu0 0.0
        %933 = vmatprep.subr.mxu0 0.0
        %934 = vmatpush1.msra.mxu0 0.0
        %935 = vmatprep.subr.mxu0 0.0
        %936 = vmatpush1.msra.mxu0 0.0
        %937 = vmatprep.subr.mxu0 0.0
        %938 = vmatpush1.msra.mxu0 0.0
        %939 = vmatprep.subr.mxu0 0.0
        %940 = vmatpush1.msra.mxu0 0.0
        %941 = vmatprep.subr.mxu0 0.0
        %942 = vmatpush1.msra.mxu0 0.0
        %943 = vmatprep.subr.mxu0 0.0
        %944 = vmatpush1.msra.mxu0 0.0
        %945 = vmatprep.subr.mxu0 0.0
        %946 = vmatpush1.msra.mxu0 0.0
        %947 = vmatprep.mubr.f32.mxu0 0.0
        %948 = vmatmul.mubr.f32.gmra.mrb[0].mxu0 0.0
        %v949 = vpop.f32.mrb[0].mxu0
        %v950 = vadd.f32 0.0, %v949
        %v951 = vpop.f32.mrb[0].mxu0
        %v952 = vadd.f32 0.0, %v951
        %953 = vdwg.mxu0
        %v954 = vadd.f32 %v808, %v879
        %v955 = vadd.f32 %v809, %v881
        %v956 = vadd.f32 %v810, %v950
        %v957 = vadd.f32 %v811, %v952
        %v958 = vxor.u32 %v954, 2147483648
        %v959 = vxor.u32 %v955, 2147483648
        %v960 = vxor.u32 %v956, 2147483648
        %v961 = vmul.f32 %v958, 1.442695
        %v962 = vpow.pop %v961
        %v963 = vmul.f32 %v959, 1.442695
        %v964 = vpow.pop %v963
        %v965 = vmul.f32 %v960, 1.442695
        %v966 = vpow.pop %v965
        %v967 = vadd.f32 %v962, 1.0
        %v968 = vadd.f32 %v964, 1.0
        %v969 = vadd.f32 %v966, 1.0
        %v970 = vrcp.pop %v967
        %v971 = vmul.f32 1.0, %v970
        %v972 = vrcp.pop %v968
        %v973 = vmul.f32 1.0, %v972
        %v974 = vrcp.pop %v969
        %v975 = vmul.f32 1.0, %v974
        %v976 = vtanh.pop %v957
        %v977 = vmul.f32 %v973, 0.0
        %v978 = vmul.f32 %v971, %v976
        %v979 = vadd.f32 %v977, %v978
        %v980 = vtanh.pop %v979
        %v981 = vmul.f32 %v975, %v980
        %vm982 = vcmp.gt.s32.totalorder %v807, 0
        %v983 = vsel %vm982, 1, 0
        %984 = vset.pattern.permute.xlu0 0
        %985 = vperm.xlu0 %984, %v983
        %v986 = vpop.permute.xlu0 %985
        %vm987 = vcmp.eq.s32.totalorder %v986, 1
        %v988 = vsel %vm987, %v979, 0.0
        %v989 = vsel %vm987, %v981, 0.0
        %v990 = vld [vmem:[#allocation2 + $0x20] sm:$0xff]
        %v991 = vld [vmem:[#allocation2 + $0x28] sm:$0xff]
        %v992 = vld [vmem:[#allocation2 + $0x30] sm:$0xff]
        %v993 = vld [vmem:[#allocation2 + $0x38] sm:$0xff]
        %994 = vmatprep.subr.mxu0 %v744
        %995 = vmatpush1.msra.mxu0 %v743
        %996 = vmatprep.subr.mxu0 %v748
        %997 = vmatpush1.msra.mxu0 %v747
        %998 = vmatprep.subr.mxu0 %v752
        %999 = vmatpush1.msra.mxu0 %v751
        %1000 = vmatprep.subr.mxu0 %v756
        %1001 = vmatpush1.msra.mxu0 %v755
        %1002 = vmatprep.subr.mxu0 %v760
        %1003 = vmatpush1.msra.mxu0 %v759
        %1004 = vmatprep.subr.mxu0 %v764
        %1005 = vmatpush1.msra.mxu0 %v763
        %1006 = vmatprep.subr.mxu0 %v768
        %1007 = vmatpush1.msra.mxu0 %v767
        %1008 = vmatprep.subr.mxu0 %v772
        %1009 = vmatpush1.msra.mxu0 %v771
        %1010 = vmatprep.subr.mxu0 %v776
        %1011 = vmatpush1.msra.mxu0 %v775
        %1012 = vmatprep.subr.mxu0 %v780
        %1013 = vmatpush1.msra.mxu0 %v779
        %1014 = vmatprep.subr.mxu0 %v784
        %1015 = vmatpush1.msra.mxu0 %v783
        %1016 = vmatprep.subr.mxu0 %v788
        %1017 = vmatpush1.msra.mxu0 %v787
        %1018 = vmatprep.subr.mxu0 %v792
        %1019 = vmatpush1.msra.mxu0 %v791
        %1020 = vmatprep.subr.mxu0 %v796
        %1021 = vmatpush1.msra.mxu0 %v795
        %1022 = vmatprep.subr.mxu0 %v800
        %1023 = vmatpush1.msra.mxu0 %v799
        %1024 = vmatprep.subr.mxu0 %v804
        %1025 = vmatpush1.msra.mxu0 %v803
        %1026 = vmatprep.subr.mxu0 0.0
        %1027 = vmatpush1.msra.mxu0 0.0
        %1028 = vmatprep.subr.mxu0 0.0
        %1029 = vmatpush1.msra.mxu0 0.0
        %1030 = vmatprep.subr.mxu0 0.0
        %1031 = vmatpush1.msra.mxu0 0.0
        %1032 = vmatprep.subr.mxu0 0.0
        %1033 = vmatpush1.msra.mxu0 0.0
        %1034 = vmatprep.subr.mxu0 0.0
        %1035 = vmatpush1.msra.mxu0 0.0
        %1036 = vmatprep.subr.mxu0 0.0
        %1037 = vmatpush1.msra.mxu0 0.0
        %1038 = vmatprep.subr.mxu0 0.0
        %1039 = vmatpush1.msra.mxu0 0.0
        %1040 = vmatprep.subr.mxu0 0.0
        %1041 = vmatpush1.msra.mxu0 0.0
        %1042 = vmatprep.subr.mxu0 0.0
        %1043 = vmatpush1.msra.mxu0 0.0
        %1044 = vmatprep.subr.mxu0 0.0
        %1045 = vmatpush1.msra.mxu0 0.0
        %1046 = vmatprep.subr.mxu0 0.0
        %1047 = vmatpush1.msra.mxu0 0.0
        %1048 = vmatprep.subr.mxu0 0.0
        %1049 = vmatpush1.msra.mxu0 0.0
        %1050 = vmatprep.subr.mxu0 0.0
        %1051 = vmatpush1.msra.mxu0 0.0
        %1052 = vmatprep.subr.mxu0 0.0
        %1053 = vmatpush1.msra.mxu0 0.0
        %1054 = vmatprep.subr.mxu0 0.0
        %1055 = vmatpush1.msra.mxu0 0.0
        %1056 = vmatprep.subr.mxu0 0.0
        %1057 = vmatpush1.msra.mxu0 0.0
        %1058 = vmatprep.mubr.f32.mxu0 0.0
        %1059 = vmatmul.mubr.f32.gmra.mrb[0].mxu0 %v989
        %v1060 = vpop.f32.mrb[0].mxu0
        %v1061 = vadd.f32 0.0, %v1060
        %v1062 = vpop.f32.mrb[0].mxu0
        %v1063 = vadd.f32 0.0, %v1062
        %1064 = vdwg.mxu0
        %1065 = vmatprep.subr.mxu0 %v746
        %1066 = vmatpush1.msra.mxu0 %v745
        %1067 = vmatprep.subr.mxu0 %v750
        %1068 = vmatpush1.msra.mxu0 %v749
        %1069 = vmatprep.subr.mxu0 %v754
        %1070 = vmatpush1.msra.mxu0 %v753
        %1071 = vmatprep.subr.mxu0 %v758
        %1072 = vmatpush1.msra.mxu0 %v757
        %1073 = vmatprep.subr.mxu0 %v762
        %1074 = vmatpush1.msra.mxu0 %v761
        %1075 = vmatprep.subr.mxu0 %v766
        %1076 = vmatpush1.msra.mxu0 %v765
        %1077 = vmatprep.subr.mxu0 %v770
        %1078 = vmatpush1.msra.mxu0 %v769
        %1079 = vmatprep.subr.mxu0 %v774
        %1080 = vmatpush1.msra.mxu0 %v773
        %1081 = vmatprep.subr.mxu0 %v778
        %1082 = vmatpush1.msra.mxu0 %v777
        %1083 = vmatprep.subr.mxu0 %v782
        %1084 = vmatpush1.msra.mxu0 %v781
        %1085 = vmatprep.subr.mxu0 %v786
        %1086 = vmatpush1.msra.mxu0 %v785
        %1087 = vmatprep.subr.mxu0 %v790
        %1088 = vmatpush1.msra.mxu0 %v789
        %1089 = vmatprep.subr.mxu0 %v794
        %1090 = vmatpush1.msra.mxu0 %v793
        %1091 = vmatprep.subr.mxu0 %v798
        %1092 = vmatpush1.msra.mxu0 %v797
        %1093 = vmatprep.subr.mxu0 %v802
        %1094 = vmatpush1.msra.mxu0 %v801
        %1095 = vmatprep.subr.mxu0 %v806
        %1096 = vmatpush1.msra.mxu0 %v805
        %1097 = vmatprep.subr.mxu0 0.0
        %1098 = vmatpush1.msra.mxu0 0.0
        %1099 = vmatprep.subr.mxu0 0.0
        %1100 = vmatpush1.msra.mxu0 0.0
        %1101 = vmatprep.subr.mxu0 0.0
        %1102 = vmatpush1.msra.mxu0 0.0
        %1103 = vmatprep.subr.mxu0 0.0
        %1104 = vmatpush1.msra.mxu0 0.0
        %1105 = vmatprep.subr.mxu0 0.0
        %1106 = vmatpush1.msra.mxu0 0.0
        %1107 = vmatprep.subr.mxu0 0.0
        %1108 = vmatpush1.msra.mxu0 0.0
        %1109 = vmatprep.subr.mxu0 0.0
        %1110 = vmatpush1.msra.mxu0 0.0
        %1111 = vmatprep.subr.mxu0 0.0
        %1112 = vmatpush1.msra.mxu0 0.0
        %1113 = vmatprep.subr.mxu0 0.0
        %1114 = vmatpush1.msra.mxu0 0.0
        %1115 = vmatprep.subr.mxu0 0.0
        %1116 = vmatpush1.msra.mxu0 0.0
        %1117 = vmatprep.subr.mxu0 0.0
        %1118 = vmatpush1.msra.mxu0 0.0
        %1119 = vmatprep.subr.mxu0 0.0
        %1120 = vmatpush1.msra.mxu0 0.0
        %1121 = vmatprep.subr.mxu0 0.0
        %1122 = vmatpush1.msra.mxu0 0.0
        %1123 = vmatprep.subr.mxu0 0.0
        %1124 = vmatpush1.msra.mxu0 0.0
        %1125 = vmatprep.subr.mxu0 0.0
        %1126 = vmatpush1.msra.mxu0 0.0
        %1127 = vmatprep.subr.mxu0 0.0
        %1128 = vmatpush1.msra.mxu0 0.0
        %1129 = vmatprep.mubr.f32.mxu0 0.0
        %1130 = vmatmul.mubr.f32.gmra.mrb[0].mxu0 %v989
        %v1131 = vpop.f32.mrb[0].mxu0
        %v1132 = vadd.f32 0.0, %v1131
        %v1133 = vpop.f32.mrb[0].mxu0
        %v1134 = vadd.f32 0.0, %v1133
        %1135 = vdwg.mxu0
        %v1136 = vadd.f32 %v990, %v1061
        %v1137 = vadd.f32 %v991, %v1063
        %v1138 = vadd.f32 %v992, %v1132
        %v1139 = vadd.f32 %v993, %v1134
        %v1140 = vxor.u32 %v1136, 2147483648
        %v1141 = vxor.u32 %v1137, 2147483648
        %v1142 = vxor.u32 %v1138, 2147483648
        %v1143 = vmul.f32 %v1140, 1.442695
        %v1144 = vpow.pop %v1143
        %v1145 = vmul.f32 %v1141, 1.442695
        %v1146 = vpow.pop %v1145
        %v1147 = vmul.f32 %v1142, 1.442695
        %v1148 = vpow.pop %v1147
        %v1149 = vadd.f32 %v1144, 1.0
        %v1150 = vadd.f32 %v1146, 1.0
        %v1151 = vadd.f32 %v1148, 1.0
        %v1152 = vrcp.pop %v1149
        %v1153 = vmul.f32 1.0, %v1152
        %v1154 = vrcp.pop %v1150
        %v1155 = vmul.f32 1.0, %v1154
        %v1156 = vrcp.pop %v1151
        %v1157 = vmul.f32 1.0, %v1156
        %v1158 = vtanh.pop %v1139
        %v1159 = vmul.f32 %v1155, %v988
        %v1160 = vmul.f32 %v1153, %v1158
        %v1161 = vadd.f32 %v1159, %v1160
        %v1162 = vtanh.pop %v1161
        %v1163 = vmul.f32 %v1157, %v1162
        %vm1164 = vcmp.gt.s32.totalorder %v807, 1
        %v1165 = vsel %vm1164, 1, 0
        %1166 = vset.pattern.permute.xlu0 0
        %1167 = vperm.xlu0 %1166, %v1165
        %v1168 = vpop.permute.xlu0 %1167
        %vm1169 = vcmp.eq.s32.totalorder %v1168, 1
        %v1170 = vsel %vm1169, %v1161, %v988
        %v1171 = vsel %vm1169, %v1163, %v989
        %v1172 = vld [vmem:[#allocation2 + $0x40] sm:$0xff]
        %v1173 = vld [vmem:[#allocation2 + $0x48] sm:$0xff]
        %v1174 = vld [vmem:[#allocation2 + $0x50] sm:$0xff]
        %v1175 = vld [vmem:[#allocation2 + $0x58] sm:$0xff]
        %1176 = vmatprep.subr.mxu0 %v744
        %1177 = vmatpush1.msra.mxu0 %v743
        %1178 = vmatprep.subr.mxu0 %v748
        %1179 = vmatpush1.msra.mxu0 %v747
        %1180 = vmatprep.subr.mxu0 %v752
        %1181 = vmatpush1.msra.mxu0 %v751
        %1182 = vmatprep.subr.mxu0 %v756
        %1183 = vmatpush1.msra.mxu0 %v755
        %1184 = vmatprep.subr.mxu0 %v760
        %1185 = vmatpush1.msra.mxu0 %v759
        %1186 = vmatprep.subr.mxu0 %v764
        %1187 = vmatpush1.msra.mxu0 %v763
        %1188 = vmatprep.subr.mxu0 %v768
        %1189 = vmatpush1.msra.mxu0 %v767
        %1190 = vmatprep.subr.mxu0 %v772
        %1191 = vmatpush1.msra.mxu0 %v771
        %1192 = vmatprep.subr.mxu0 %v776
        %1193 = vmatpush1.msra.mxu0 %v775
        %1194 = vmatprep.subr.mxu0 %v780
        %1195 = vmatpush1.msra.mxu0 %v779
        %1196 = vmatprep.subr.mxu0 %v784
        %1197 = vmatpush1.msra.mxu0 %v783
        %1198 = vmatprep.subr.mxu0 %v788
        %1199 = vmatpush1.msra.mxu0 %v787
        %1200 = vmatprep.subr.mxu0 %v792
        %1201 = vmatpush1.msra.mxu0 %v791
        %1202 = vmatprep.subr.mxu0 %v796
        %1203 = vmatpush1.msra.mxu0 %v795
        %1204 = vmatprep.subr.mxu0 %v800
        %1205 = vmatpush1.msra.mxu0 %v799
        %1206 = vmatprep.subr.mxu0 %v804
        %1207 = vmatpush1.msra.mxu0 %v803
        %1208 = vmatprep.subr.mxu0 0.0
        %1209 = vmatpush1.msra.mxu0 0.0
        %1210 = vmatprep.subr.mxu0 0.0
        %1211 = vmatpush1.msra.mxu0 0.0
        %1212 = vmatprep.subr.mxu0 0.0
        %1213 = vmatpush1.msra.mxu0 0.0
        %1214 = vmatprep.subr.mxu0 0.0
        %1215 = vmatpush1.msra.mxu0 0.0
        %1216 = vmatprep.subr.mxu0 0.0
        %1217 = vmatpush1.msra.mxu0 0.0
        %1218 = vmatprep.subr.mxu0 0.0
        %1219 = vmatpush1.msra.mxu0 0.0
        %1220 = vmatprep.subr.mxu0 0.0
        %1221 = vmatpush1.msra.mxu0 0.0
        %1222 = vmatprep.subr.mxu0 0.0
        %1223 = vmatpush1.msra.mxu0 0.0
        %1224 = vmatprep.subr.mxu0 0.0
        %1225 = vmatpush1.msra.mxu0 0.0
        %1226 = vmatprep.subr.mxu0 0.0
        %1227 = vmatpush1.msra.mxu0 0.0
        %1228 = vmatprep.subr.mxu0 0.0
        %1229 = vmatpush1.msra.mxu0 0.0
        %1230 = vmatprep.subr.mxu0 0.0
        %1231 = vmatpush1.msra.mxu0 0.0
        %1232 = vmatprep.subr.mxu0 0.0
        %1233 = vmatpush1.msra.mxu0 0.0
        %1234 = vmatprep.subr.mxu0 0.0
        %1235 = vmatpush1.msra.mxu0 0.0
        %1236 = vmatprep.subr.mxu0 0.0
        %1237 = vmatpush1.msra.mxu0 0.0
        %1238 = vmatprep.subr.mxu0 0.0
        %1239 = vmatpush1.msra.mxu0 0.0
        %1240 = vmatprep.mubr.f32.mxu0 0.0
        %1241 = vmatmul.mubr.f32.gmra.mrb[0].mxu0 %v1171
        %v1242 = vpop.f32.mrb[0].mxu0
        %v1243 = vadd.f32 0.0, %v1242
        %v1244 = vpop.f32.mrb[0].mxu0
        %v1245 = vadd.f32 0.0, %v1244
        %1246 = vdwg.mxu0
        %1247 = vmatprep.subr.mxu0 %v746
        %1248 = vmatpush1.msra.mxu0 %v745
        %1249 = vmatprep.subr.mxu0 %v750
        %1250 = vmatpush1.msra.mxu0 %v749
        %1251 = vmatprep.subr.mxu0 %v754
        %1252 = vmatpush1.msra.mxu0 %v753
        %1253 = vmatprep.subr.mxu0 %v758
        %1254 = vmatpush1.msra.mxu0 %v757
        %1255 = vmatprep.subr.mxu0 %v762
        %1256 = vmatpush1.msra.mxu0 %v761
        %1257 = vmatprep.subr.mxu0 %v766
        %1258 = vmatpush1.msra.mxu0 %v765
        %1259 = vmatprep.subr.mxu0 %v770
        %1260 = vmatpush1.msra.mxu0 %v769
        %1261 = vmatprep.subr.mxu0 %v774
        %1262 = vmatpush1.msra.mxu0 %v773
        %1263 = vmatprep.subr.mxu0 %v778
        %1264 = vmatpush1.msra.mxu0 %v777
        %1265 = vmatprep.subr.mxu0 %v782
        %1266 = vmatpush1.msra.mxu0 %v781
        %1267 = vmatprep.subr.mxu0 %v786
        %1268 = vmatpush1.msra.mxu0 %v785
        %1269 = vmatprep.subr.mxu0 %v790
        %1270 = vmatpush1.msra.mxu0 %v789
        %1271 = vmatprep.subr.mxu0 %v794
        %1272 = vmatpush1.msra.mxu0 %v793
        %1273 = vmatprep.subr.mxu0 %v798
        %1274 = vmatpush1.msra.mxu0 %v797
        %1275 = vmatprep.subr.mxu0 %v802
        %1276 = vmatpush1.msra.mxu0 %v801
        %1277 = vmatprep.subr.mxu0 %v806
        %1278 = vmatpush1.msra.mxu0 %v805
        %1279 = vmatprep.subr.mxu0 0.0
        %1280 = vmatpush1.msra.mxu0 0.0
        %1281 = vmatprep.subr.mxu0 0.0
        %1282 = vmatpush1.msra.mxu0 0.0
        %1283 = vmatprep.subr.mxu0 0.0
        %1284 = vmatpush1.msra.mxu0 0.0
        %1285 = vmatprep.subr.mxu0 0.0
        %1286 = vmatpush1.msra.mxu0 0.0
        %1287 = vmatprep.subr.mxu0 0.0
        %1288 = vmatpush1.msra.mxu0 0.0
        %1289 = vmatprep.subr.mxu0 0.0
        %1290 = vmatpush1.msra.mxu0 0.0
        %1291 = vmatprep.subr.mxu0 0.0
        %1292 = vmatpush1.msra.mxu0 0.0
        %1293 = vmatprep.subr.mxu0 0.0
        %1294 = vmatpush1.msra.mxu0 0.0
        %1295 = vmatprep.subr.mxu0 0.0
        %1296 = vmatpush1.msra.mxu0 0.0
        %1297 = vmatprep.subr.mxu0 0.0
        %1298 = vmatpush1.msra.mxu0 0.0
        %1299 = vmatprep.subr.mxu0 0.0
        %1300 = vmatpush1.msra.mxu0 0.0
        %1301 = vmatprep.subr.mxu0 0.0
        %1302 = vmatpush1.msra.mxu0 0.0
        %1303 = vmatprep.subr.mxu0 0.0
        %1304 = vmatpush1.msra.mxu0 0.0
        %1305 = vmatprep.subr.mxu0 0.0
        %1306 = vmatpush1.msra.mxu0 0.0
        %1307 = vmatprep.subr.mxu0 0.0
        %1308 = vmatpush1.msra.mxu0 0.0
        %1309 = vmatprep.subr.mxu0 0.0
        %1310 = vmatpush1.msra.mxu0 0.0
        %1311 = vmatprep.mubr.f32.mxu0 0.0
        %1312 = vmatmul.mubr.f32.gmra.mrb[0].mxu0 %v1171
        %v1313 = vpop.f32.mrb[0].mxu0
        %v1314 = vadd.f32 0.0, %v1313
        %v1315 = vpop.f32.mrb[0].mxu0
        %v1316 = vadd.f32 0.0, %v1315
        %1317 = vdwg.mxu0
        %v1318 = vadd.f32 %v1172, %v1243
        %v1319 = vadd.f32 %v1173, %v1245
        %v1320 = vadd.f32 %v1174, %v1314
        %v1321 = vadd.f32 %v1175, %v1316
        %v1322 = vxor.u32 %v1318, 2147483648
        %v1323 = vxor.u32 %v1319, 2147483648
        %v1324 = vxor.u32 %v1320, 2147483648
        %v1325 = vmul.f32 %v1322, 1.442695
        %v1326 = vpow.pop %v1325
        %v1327 = vmul.f32 %v1323, 1.442695
        %v1328 = vpow.pop %v1327
        %v1329 = vmul.f32 %v1324, 1.442695
        %v1330 = vpow.pop %v1329
        %v1331 = vadd.f32 %v1326, 1.0
        %v1332 = vadd.f32 %v1328, 1.0
        %v1333 = vadd.f32 %v1330, 1.0
        %v1334 = vrcp.pop %v1331
        %v1335 = vmul.f32 1.0, %v1334
        %v1336 = vrcp.pop %v1332
        %v1337 = vmul.f32 1.0, %v1336
        %v1338 = vrcp.pop %v1333
        %v1339 = vmul.f32 1.0, %v1338
        %v1340 = vtanh.pop %v1321
        %v1341 = vmul.f32 %v1337, %v1170
        %v1342 = vmul.f32 %v1335, %v1340
        %v1343 = vadd.f32 %v1341, %v1342
        %v1344 = vtanh.pop %v1343
        %v1345 = vmul.f32 %v1339, %v1344
        %vm1346 = vcmp.gt.s32.totalorder %v807, 2
        %v1347 = vsel %vm1346, 1, 0
        %1348 = vset.pattern.permute.xlu0 0
        %1349 = vperm.xlu0 %1348, %v1347
        %v1350 = vpop.permute.xlu0 %1349
        %vm1351 = vcmp.eq.s32.totalorder %v1350, 1
        %v1352 = vsel %vm1351, %v1343, %v1170
        %v1353 = vsel %vm1351, %v1345, %v1171
        %v1354 = vld [vmem:[#allocation2 + $0x60] sm:$0xff]
        %v1355 = vld [vmem:[#allocation2 + $0x68] sm:$0xff]
        %v1356 = vld [vmem:[#allocation2 + $0x70] sm:$0xff]
        %v1357 = vld [vmem:[#allocation2 + $0x78] sm:$0xff]
        %1358 = vmatprep.subr.mxu0 %v744
        %1359 = vmatpush1.msra.mxu0 %v743
        %1360 = vmatprep.subr.mxu0 %v748
        %1361 = vmatpush1.msra.mxu0 %v747
        %1362 = vmatprep.subr.mxu0 %v752
        %1363 = vmatpush1.msra.mxu0 %v751
        %1364 = vmatprep.subr.mxu0 %v756
        %1365 = vmatpush1.msra.mxu0 %v755
        %1366 = vmatprep.subr.mxu0 %v760
        %1367 = vmatpush1.msra.mxu0 %v759
        %1368 = vmatprep.subr.mxu0 %v764
        %1369 = vmatpush1.msra.mxu0 %v763
        %1370 = vmatprep.subr.mxu0 %v768
        %1371 = vmatpush1.msra.mxu0 %v767
        %1372 = vmatprep.subr.mxu0 %v772
        %1373 = vmatpush1.msra.mxu0 %v771
        %1374 = vmatprep.subr.mxu0 %v776
        %1375 = vmatpush1.msra.mxu0 %v775
        %1376 = vmatprep.subr.mxu0 %v780
        %1377 = vmatpush1.msra.mxu0 %v779
        %1378 = vmatprep.subr.mxu0 %v784
        %1379 = vmatpush1.msra.mxu0 %v783
        %1380 = vmatprep.subr.mxu0 %v788
        %1381 = vmatpush1.msra.mxu0 %v787
        %1382 = vmatprep.subr.mxu0 %v792
        %1383 = vmatpush1.msra.mxu0 %v791
        %1384 = vmatprep.subr.mxu0 %v796
        %1385 = vmatpush1.msra.mxu0 %v795
        %1386 = vmatprep.subr.mxu0 %v800
        %1387 = vmatpush1.msra.mxu0 %v799
        %1388 = vmatprep.subr.mxu0 %v804
        %1389 = vmatpush1.msra.mxu0 %v803
        %1390 = vmatprep.subr.mxu0 0.0
        %1391 = vmatpush1.msra.mxu0 0.0
        %1392 = vmatprep.subr.mxu0 0.0
        %1393 = vmatpush1.msra.mxu0 0.0
        %1394 = vmatprep.subr.mxu0 0.0
        %1395 = vmatpush1.msra.mxu0 0.0
        %1396 = vmatprep.subr.mxu0 0.0
        %1397 = vmatpush1.msra.mxu0 0.0
        %1398 = vmatprep.subr.mxu0 0.0
        %1399 = vmatpush1.msra.mxu0 0.0
        %1400 = vmatprep.subr.mxu0 0.0
        %1401 = vmatpush1.msra.mxu0 0.0
        %1402 = vmatprep.subr.mxu0 0.0
        %1403 = vmatpush1.msra.mxu0 0.0
        %1404 = vmatprep.subr.mxu0 0.0
        %1405 = vmatpush1.msra.mxu0 0.0
        %1406 = vmatprep.subr.mxu0 0.0
        %1407 = vmatpush1.msra.mxu0 0.0
        %1408 = vmatprep.subr.mxu0 0.0
        %1409 = vmatpush1.msra.mxu0 0.0
        %1410 = vmatprep.subr.mxu0 0.0
        %1411 = vmatpush1.msra.mxu0 0.0
        %1412 = vmatprep.subr.mxu0 0.0
        %1413 = vmatpush1.msra.mxu0 0.0
        %1414 = vmatprep.subr.mxu0 0.0
        %1415 = vmatpush1.msra.mxu0 0.0
        %1416 = vmatprep.subr.mxu0 0.0
        %1417 = vmatpush1.msra.mxu0 0.0
        %1418 = vmatprep.subr.mxu0 0.0
        %1419 = vmatpush1.msra.mxu0 0.0
        %1420 = vmatprep.subr.mxu0 0.0
        %1421 = vmatpush1.msra.mxu0 0.0
        %1422 = vmatprep.mubr.f32.mxu0 0.0
        %1423 = vmatmul.mubr.f32.gmra.mrb[0].mxu0 %v1353
        %v1424 = vpop.f32.mrb[0].mxu0
        %v1425 = vadd.f32 0.0, %v1424
        %v1426 = vpop.f32.mrb[0].mxu0
        %v1427 = vadd.f32 0.0, %v1426
        %1428 = vdwg.mxu0
        %1429 = vmatprep.subr.mxu0 %v746
        %1430 = vmatpush1.msra.mxu0 %v745
        %1431 = vmatprep.subr.mxu0 %v750
        %1432 = vmatpush1.msra.mxu0 %v749
        %1433 = vmatprep.subr.mxu0 %v754
        %1434 = vmatpush1.msra.mxu0 %v753
        %1435 = vmatprep.subr.mxu0 %v758
        %1436 = vmatpush1.msra.mxu0 %v757
        %1437 = vmatprep.subr.mxu0 %v762
        %1438 = vmatpush1.msra.mxu0 %v761
        %1439 = vmatprep.subr.mxu0 %v766
        %1440 = vmatpush1.msra.mxu0 %v765
        %1441 = vmatprep.subr.mxu0 %v770
        %1442 = vmatpush1.msra.mxu0 %v769
        %1443 = vmatprep.subr.mxu0 %v774
        %1444 = vmatpush1.msra.mxu0 %v773
        %1445 = vmatprep.subr.mxu0 %v778
        %1446 = vmatpush1.msra.mxu0 %v777
        %1447 = vmatprep.subr.mxu0 %v782
        %1448 = vmatpush1.msra.mxu0 %v781
        %1449 = vmatprep.subr.mxu0 %v786
        %1450 = vmatpush1.msra.mxu0 %v785
        %1451 = vmatprep.subr.mxu0 %v790
        %1452 = vmatpush1.msra.mxu0 %v789
        %1453 = vmatprep.subr.mxu0 %v794
        %1454 = vmatpush1.msra.mxu0 %v793
        %1455 = vmatprep.subr.mxu0 %v798
        %1456 = vmatpush1.msra.mxu0 %v797
        %1457 = vmatprep.subr.mxu0 %v802
        %1458 = vmatpush1.msra.mxu0 %v801
        %1459 = vmatprep.subr.mxu0 %v806
        %1460 = vmatpush1.msra.mxu0 %v805
        %1461 = vmatprep.subr.mxu0 0.0
        %1462 = vmatpush1.msra.mxu0 0.0
        %1463 = vmatprep.subr.mxu0 0.0
        %1464 = vmatpush1.msra.mxu0 0.0
        %1465 = vmatprep.subr.mxu0 0.0
        %1466 = vmatpush1.msra.mxu0 0.0
        %1467 = vmatprep.subr.mxu0 0.0
        %1468 = vmatpush1.msra.mxu0 0.0
        %1469 = vmatprep.subr.mxu0 0.0
        %1470 = vmatpush1.msra.mxu0 0.0
        %1471 = vmatprep.subr.mxu0 0.0
        %1472 = vmatpush1.msra.mxu0 0.0
        %1473 = vmatprep.subr.mxu0 0.0
        %1474 = vmatpush1.msra.mxu0 0.0
        %1475 = vmatprep.subr.mxu0 0.0
        %1476 = vmatpush1.msra.mxu0 0.0
        %1477 = vmatprep.subr.mxu0 0.0
        %1478 = vmatpush1.msra.mxu0 0.0
        %1479 = vmatprep.subr.mxu0 0.0
        %1480 = vmatpush1.msra.mxu0 0.0
        %1481 = vmatprep.subr.mxu0 0.0
        %1482 = vmatpush1.msra.mxu0 0.0
        %1483 = vmatprep.subr.mxu0 0.0
        %1484 = vmatpush1.msra.mxu0 0.0
        %1485 = vmatprep.subr.mxu0 0.0
        %1486 = vmatpush1.msra.mxu0 0.0
        %1487 = vmatprep.subr.mxu0 0.0
        %1488 = vmatpush1.msra.mxu0 0.0
        %1489 = vmatprep.subr.mxu0 0.0
        %1490 = vmatpush1.msra.mxu0 0.0
        %1491 = vmatprep.subr.mxu0 0.0
        %1492 = vmatpush1.msra.mxu0 0.0
        %1493 = vmatprep.mubr.f32.mxu0 0.0
        %1494 = vmatmul.mubr.f32.gmra.mrb[0].mxu0 %v1353
        %v1495 = vpop.f32.mrb[0].mxu0
        %v1496 = vadd.f32 0.0, %v1495
        %v1497 = vpop.f32.mrb[0].mxu0
        %v1498 = vadd.f32 0.0, %v1497
        %1499 = vdwg.mxu0
        %v1500 = vadd.f32 %v1354, %v1425
        %v1501 = vadd.f32 %v1355, %v1427
        %v1502 = vadd.f32 %v1356, %v1496
        %v1503 = vadd.f32 %v1357, %v1498
        %v1504 = vxor.u32 %v1500, 2147483648
        %v1505 = vxor.u32 %v1501, 2147483648
        %v1506 = vxor.u32 %v1502, 2147483648
        %v1507 = vmul.f32 %v1504, 1.442695
        %v1508 = vpow.pop %v1507
        %v1509 = vmul.f32 %v1505, 1.442695
        %v1510 = vpow.pop %v1509
        %v1511 = vmul.f32 %v1506, 1.442695
        %v1512 = vpow.pop %v1511
        %v1513 = vadd.f32 %v1508, 1.0
        %v1514 = vadd.f32 %v1510, 1.0
        %v1515 = vadd.f32 %v1512, 1.0
        %v1516 = vrcp.pop %v1513
        %v1517 = vmul.f32 1.0, %v1516
        %v1518 = vrcp.pop %v1514
        %v1519 = vmul.f32 1.0, %v1518
        %v1520 = vrcp.pop %v1515
        %v1521 = vmul.f32 1.0, %v1520
        %v1522 = vtanh.pop %v1503
        %v1523 = vmul.f32 %v1519, %v1352
        %v1524 = vmul.f32 %v1517, %v1522
        %v1525 = vadd.f32 %v1523, %v1524
        %v1526 = vtanh.pop %v1525
        %v1527 = vmul.f32 %v1521, %v1526
        %vm1528 = vcmp.gt.s32.totalorder %v807, 3
        %v1529 = vsel %vm1528, 1, 0
        %1530 = vset.pattern.permute.xlu0 0
        %1531 = vperm.xlu0 %1530, %v1529
        %v1532 = vpop.permute.xlu0 %1531
        %vm1533 = vcmp.eq.s32.totalorder %v1532, 1
        %v1534 = vsel %vm1533, %v1525, %v1352
        %v1535 = vsel %vm1533, %v1527, %v1353
        %v1536 = vld [vmem:[#allocation2 + $0x80] sm:$0xff]
        %v1537 = vld [vmem:[#allocation2 + $0x88] sm:$0xff]
        %v1538 = vld [vmem:[#allocation2 + $0x90] sm:$0xff]
        %v1539 = vld [vmem:[#allocation2 + $0x98] sm:$0xff]
        %1540 = vmatprep.subr.mxu0 %v744
        %1541 = vmatpush1.msra.mxu0 %v743
        %1542 = vmatprep.subr.mxu0 %v748
        %1543 = vmatpush1.msra.mxu0 %v747
        %1544 = vmatprep.subr.mxu0 %v752
        %1545 = vmatpush1.msra.mxu0 %v751
        %1546 = vmatprep.subr.mxu0 %v756
        %1547 = vmatpush1.msra.mxu0 %v755
        %1548 = vmatprep.subr.mxu0 %v760
        %1549 = vmatpush1.msra.mxu0 %v759
        %1550 = vmatprep.subr.mxu0 %v764
        %1551 = vmatpush1.msra.mxu0 %v763
        %1552 = vmatprep.subr.mxu0 %v768
        %1553 = vmatpush1.msra.mxu0 %v767
        %1554 = vmatprep.subr.mxu0 %v772
        %1555 = vmatpush1.msra.mxu0 %v771
        %1556 = vmatprep.subr.mxu0 %v776
        %1557 = vmatpush1.msra.mxu0 %v775
        %1558 = vmatprep.subr.mxu0 %v780
        %1559 = vmatpush1.msra.mxu0 %v779
        %1560 = vmatprep.subr.mxu0 %v784
        %1561 = vmatpush1.msra.mxu0 %v783
        %1562 = vmatprep.subr.mxu0 %v788
        %1563 = vmatpush1.msra.mxu0 %v787
        %1564 = vmatprep.subr.mxu0 %v792
        %1565 = vmatpush1.msra.mxu0 %v791
        %1566 = vmatprep.subr.mxu0 %v796
        %1567 = vmatpush1.msra.mxu0 %v795
        %1568 = vmatprep.subr.mxu0 %v800
        %1569 = vmatpush1.msra.mxu0 %v799
        %1570 = vmatprep.subr.mxu0 %v804
        %1571 = vmatpush1.msra.mxu0 %v803
        %1572 = vmatprep.subr.mxu0 0.0
        %1573 = vmatpush1.msra.mxu0 0.0
        %1574 = vmatprep.subr.mxu0 0.0
        %1575 = vmatpush1.msra.mxu0 0.0
        %1576 = vmatprep.subr.mxu0 0.0
        %1577 = vmatpush1.msra.mxu0 0.0
        %1578 = vmatprep.subr.mxu0 0.0
        %1579 = vmatpush1.msra.mxu0 0.0
        %1580 = vmatprep.subr.mxu0 0.0
        %1581 = vmatpush1.msra.mxu0 0.0
        %1582 = vmatprep.subr.mxu0 0.0
        %1583 = vmatpush1.msra.mxu0 0.0
        %1584 = vmatprep.subr.mxu0 0.0
        %1585 = vmatpush1.msra.mxu0 0.0
        %1586 = vmatprep.subr.mxu0 0.0
        %1587 = vmatpush1.msra.mxu0 0.0
        %1588 = vmatprep.subr.mxu0 0.0
        %1589 = vmatpush1.msra.mxu0 0.0
        %1590 = vmatprep.subr.mxu0 0.0
        %1591 = vmatpush1.msra.mxu0 0.0
        %1592 = vmatprep.subr.mxu0 0.0
        %1593 = vmatpush1.msra.mxu0 0.0
        %1594 = vmatprep.subr.mxu0 0.0
        %1595 = vmatpush1.msra.mxu0 0.0
        %1596 = vmatprep.subr.mxu0 0.0
        %1597 = vmatpush1.msra.mxu0 0.0
        %1598 = vmatprep.subr.mxu0 0.0
        %1599 = vmatpush1.msra.mxu0 0.0
        %1600 = vmatprep.subr.mxu0 0.0
        %1601 = vmatpush1.msra.mxu0 0.0
        %1602 = vmatprep.subr.mxu0 0.0
        %1603 = vmatpush1.msra.mxu0 0.0
        %1604 = vmatprep.mubr.f32.mxu0 0.0
        %1605 = vmatmul.mubr.f32.gmra.mrb[0].mxu0 %v1535
        %v1606 = vpop.f32.mrb[0].mxu0
        %v1607 = vadd.f32 0.0, %v1606
        %v1608 = vpop.f32.mrb[0].mxu0
        %v1609 = vadd.f32 0.0, %v1608
        %1610 = vdwg.mxu0
        %1611 = vmatprep.subr.mxu0 %v746
        %1612 = vmatpush1.msra.mxu0 %v745
        %1613 = vmatprep.subr.mxu0 %v750
        %1614 = vmatpush1.msra.mxu0 %v749
        %1615 = vmatprep.subr.mxu0 %v754
        %1616 = vmatpush1.msra.mxu0 %v753
        %1617 = vmatprep.subr.mxu0 %v758
        %1618 = vmatpush1.msra.mxu0 %v757
        %1619 = vmatprep.subr.mxu0 %v762
        %1620 = vmatpush1.msra.mxu0 %v761
        %1621 = vmatprep.subr.mxu0 %v766
        %1622 = vmatpush1.msra.mxu0 %v765
        %1623 = vmatprep.subr.mxu0 %v770
        %1624 = vmatpush1.msra.mxu0 %v769
        %1625 = vmatprep.subr.mxu0 %v774
        %1626 = vmatpush1.msra.mxu0 %v773
        %1627 = vmatprep.subr.mxu0 %v778
        %1628 = vmatpush1.msra.mxu0 %v777
        %1629 = vmatprep.subr.mxu0 %v782
        %1630 = vmatpush1.msra.mxu0 %v781
        %1631 = vmatprep.subr.mxu0 %v786
        %1632 = vmatpush1.msra.mxu0 %v785
        %1633 = vmatprep.subr.mxu0 %v790
        %1634 = vmatpush1.msra.mxu0 %v789
        %1635 = vmatprep.subr.mxu0 %v794
        %1636 = vmatpush1.msra.mxu0 %v793
        %1637 = vmatprep.subr.mxu0 %v798
        %1638 = vmatpush1.msra.mxu0 %v797
        %1639 = vmatprep.subr.mxu0 %v802
        %1640 = vmatpush1.msra.mxu0 %v801
        %1641 = vmatprep.subr.mxu0 %v806
        %1642 = vmatpush1.msra.mxu0 %v805
        %1643 = vmatprep.subr.mxu0 0.0
        %1644 = vmatpush1.msra.mxu0 0.0
        %1645 = vmatprep.subr.mxu0 0.0
        %1646 = vmatpush1.msra.mxu0 0.0
        %1647 = vmatprep.subr.mxu0 0.0
        %1648 = vmatpush1.msra.mxu0 0.0
        %1649 = vmatprep.subr.mxu0 0.0
        %1650 = vmatpush1.msra.mxu0 0.0
        %1651 = vmatprep.subr.mxu0 0.0
        %1652 = vmatpush1.msra.mxu0 0.0
        %1653 = vmatprep.subr.mxu0 0.0
        %1654 = vmatpush1.msra.mxu0 0.0
        %1655 = vmatprep.subr.mxu0 0.0
        %1656 = vmatpush1.msra.mxu0 0.0
        %1657 = vmatprep.subr.mxu0 0.0
        %1658 = vmatpush1.msra.mxu0 0.0
        %1659 = vmatprep.subr.mxu0 0.0
        %1660 = vmatpush1.msra.mxu0 0.0
        %1661 = vmatprep.subr.mxu0 0.0
        %1662 = vmatpush1.msra.mxu0 0.0
        %1663 = vmatprep.subr.mxu0 0.0
        %1664 = vmatpush1.msra.mxu0 0.0
        %1665 = vmatprep.subr.mxu0 0.0
        %1666 = vmatpush1.msra.mxu0 0.0
        %1667 = vmatprep.subr.mxu0 0.0
        %1668 = vmatpush1.msra.mxu0 0.0
        %1669 = vmatprep.subr.mxu0 0.0
        %1670 = vmatpush1.msra.mxu0 0.0
        %1671 = vmatprep.subr.mxu0 0.0
        %1672 = vmatpush1.msra.mxu0 0.0
        %1673 = vmatprep.subr.mxu0 0.0
        %1674 = vmatpush1.msra.mxu0 0.0
        %1675 = vmatprep.mubr.f32.mxu0 0.0
        %1676 = vmatmul.mubr.f32.gmra.mrb[0].mxu0 %v1535
        %v1677 = vpop.f32.mrb[0].mxu0
        %v1678 = vadd.f32 0.0, %v1677
        %v1679 = vpop.f32.mrb[0].mxu0
        %v1680 = vadd.f32 0.0, %v1679
        %1681 = vdwg.mxu0
        %v1682 = vadd.f32 %v1536, %v1607
        %v1683 = vadd.f32 %v1537, %v1609
        %v1684 = vadd.f32 %v1538, %v1678
        %v1685 = vadd.f32 %v1539, %v1680
        %v1686 = vxor.u32 %v1682, 2147483648
        %v1687 = vxor.u32 %v1683, 2147483648
        %v1688 = vxor.u32 %v1684, 2147483648
        %v1689 = vmul.f32 %v1686, 1.442695
        %v1690 = vpow.pop %v1689
        %v1691 = vmul.f32 %v1687, 1.442695
        %v1692 = vpow.pop %v1691
        %v1693 = vmul.f32 %v1688, 1.442695
        %v1694 = vpow.pop %v1693
        %v1695 = vadd.f32 %v1690, 1.0
        %v1696 = vadd.f32 %v1692, 1.0
        %v1697 = vadd.f32 %v1694, 1.0
        %v1698 = vrcp.pop %v1695
        %v1699 = vmul.f32 1.0, %v1698
        %v1700 = vrcp.pop %v1696
        %v1701 = vmul.f32 1.0, %v1700
        %v1702 = vrcp.pop %v1697
        %v1703 = vmul.f32 1.0, %v1702
        %v1704 = vtanh.pop %v1685
        %v1705 = vmul.f32 %v1701, %v1534
        %v1706 = vmul.f32 %v1699, %v1704
        %v1707 = vadd.f32 %v1705, %v1706
        %v1708 = vtanh.pop %v1707
        %v1709 = vmul.f32 %v1703, %v1708
        %vm1710 = vcmp.gt.s32.totalorder %v807, 4
        %v1711 = vsel %vm1710, 1, 0
        %1712 = vset.pattern.permute.xlu0 0
        %1713 = vperm.xlu0 %1712, %v1711
        %v1714 = vpop.permute.xlu0 %1713
        %vm1715 = vcmp.eq.s32.totalorder %v1714, 1
        %v1716 = vsel %vm1715, %v1707, %v1534
        %v1717 = vsel %vm1715, %v1709, %v1535
        %v1718 = vld [vmem:[#allocation2 + $0xa0] sm:$0xff]
        %v1719 = vld [vmem:[#allocation2 + $0xa8] sm:$0xff]
        %v1720 = vld [vmem:[#allocation2 + $0xb0] sm:$0xff]
        %v1721 = vld [vmem:[#allocation2 + $0xb8] sm:$0xff]
        %1722 = vmatprep.subr.mxu0 %v744
        %1723 = vmatpush1.msra.mxu0 %v743
        %1724 = vmatprep.subr.mxu0 %v748
        %1725 = vmatpush1.msra.mxu0 %v747
        %1726 = vmatprep.subr.mxu0 %v752
        %1727 = vmatpush1.msra.mxu0 %v751
        %1728 = vmatprep.subr.mxu0 %v756
        %1729 = vmatpush1.msra.mxu0 %v755
        %1730 = vmatprep.subr.mxu0 %v760
        %1731 = vmatpush1.msra.mxu0 %v759
        %1732 = vmatprep.subr.mxu0 %v764
        %1733 = vmatpush1.msra.mxu0 %v763
        %1734 = vmatprep.subr.mxu0 %v768
        %1735 = vmatpush1.msra.mxu0 %v767
        %1736 = vmatprep.subr.mxu0 %v772
        %1737 = vmatpush1.msra.mxu0 %v771
        %1738 = vmatprep.subr.mxu0 %v776
        %1739 = vmatpush1.msra.mxu0 %v775
        %1740 = vmatprep.subr.mxu0 %v780
        %1741 = vmatpush1.msra.mxu0 %v779
        %1742 = vmatprep.subr.mxu0 %v784
        %1743 = vmatpush1.msra.mxu0 %v783
        %1744 = vmatprep.subr.mxu0 %v788
        %1745 = vmatpush1.msra.mxu0 %v787
        %1746 = vmatprep.subr.mxu0 %v792
        %1747 = vmatpush1.msra.mxu0 %v791
        %1748 = vmatprep.subr.mxu0 %v796
        %1749 = vmatpush1.msra.mxu0 %v795
        %1750 = vmatprep.subr.mxu0 %v800
        %1751 = vmatpush1.msra.mxu0 %v799
        %1752 = vmatprep.subr.mxu0 %v804
        %1753 = vmatpush1.msra.mxu0 %v803
        %1754 = vmatprep.subr.mxu0 0.0
        %1755 = vmatpush1.msra.mxu0 0.0
        %1756 = vmatprep.subr.mxu0 0.0
        %1757 = vmatpush1.msra.mxu0 0.0
        %1758 = vmatprep.subr.mxu0 0.0
        %1759 = vmatpush1.msra.mxu0 0.0
        %1760 = vmatprep.subr.mxu0 0.0
        %1761 = vmatpush1.msra.mxu0 0.0
        %1762 = vmatprep.subr.mxu0 0.0
        %1763 = vmatpush1.msra.mxu0 0.0
        %1764 = vmatprep.subr.mxu0 0.0
        %1765 = vmatpush1.msra.mxu0 0.0
        %1766 = vmatprep.subr.mxu0 0.0
        %1767 = vmatpush1.msra.mxu0 0.0
        %1768 = vmatprep.subr.mxu0 0.0
        %1769 = vmatpush1.msra.mxu0 0.0
        %1770 = vmatprep.subr.mxu0 0.0
        %1771 = vmatpush1.msra.mxu0 0.0
        %1772 = vmatprep.subr.mxu0 0.0
        %1773 = vmatpush1.msra.mxu0 0.0
        %1774 = vmatprep.subr.mxu0 0.0
        %1775 = vmatpush1.msra.mxu0 0.0
        %1776 = vmatprep.subr.mxu0 0.0
        %1777 = vmatpush1.msra.mxu0 0.0
        %1778 = vmatprep.subr.mxu0 0.0
        %1779 = vmatpush1.msra.mxu0 0.0
        %1780 = vmatprep.subr.mxu0 0.0
        %1781 = vmatpush1.msra.mxu0 0.0
        %1782 = vmatprep.subr.mxu0 0.0
        %1783 = vmatpush1.msra.mxu0 0.0
        %1784 = vmatprep.subr.mxu0 0.0
        %1785 = vmatpush1.msra.mxu0 0.0
        %1786 = vmatprep.mubr.f32.mxu0 0.0
        %1787 = vmatmul.mubr.f32.gmra.mrb[0].mxu0 %v1717
        %v1788 = vpop.f32.mrb[0].mxu0
        %v1789 = vadd.f32 0.0, %v1788
        %v1790 = vpop.f32.mrb[0].mxu0
        %v1791 = vadd.f32 0.0, %v1790
        %1792 = vdwg.mxu0
        %1793 = vmatprep.subr.mxu0 %v746
        %1794 = vmatpush1.msra.mxu0 %v745
        %1795 = vmatprep.subr.mxu0 %v750
        %1796 = vmatpush1.msra.mxu0 %v749
        %1797 = vmatprep.subr.mxu0 %v754
        %1798 = vmatpush1.msra.mxu0 %v753
        %1799 = vmatprep.subr.mxu0 %v758
        %1800 = vmatpush1.msra.mxu0 %v757
        %1801 = vmatprep.subr.mxu0 %v762
        %1802 = vmatpush1.msra.mxu0 %v761
        %1803 = vmatprep.subr.mxu0 %v766
        %1804 = vmatpush1.msra.mxu0 %v765
        %1805 = vmatprep.subr.mxu0 %v770
        %1806 = vmatpush1.msra.mxu0 %v769
        %1807 = vmatprep.subr.mxu0 %v774
        %1808 = vmatpush1.msra.mxu0 %v773
        %1809 = vmatprep.subr.mxu0 %v778
        %1810 = vmatpush1.msra.mxu0 %v777
        %1811 = vmatprep.subr.mxu0 %v782
        %1812 = vmatpush1.msra.mxu0 %v781
        %1813 = vmatprep.subr.mxu0 %v786
        %1814 = vmatpush1.msra.mxu0 %v785
        %1815 = vmatprep.subr.mxu0 %v790
        %1816 = vmatpush1.msra.mxu0 %v789
        %1817 = vmatprep.subr.mxu0 %v794
        %1818 = vmatpush1.msra.mxu0 %v793
        %1819 = vmatprep.subr.mxu0 %v798
        %1820 = vmatpush1.msra.mxu0 %v797
        %1821 = vmatprep.subr.mxu0 %v802
        %1822 = vmatpush1.msra.mxu0 %v801
        %1823 = vmatprep.subr.mxu0 %v806
        %1824 = vmatpush1.msra.mxu0 %v805
        %1825 = vmatprep.subr.mxu0 0.0
        %1826 = vmatpush1.msra.mxu0 0.0
        %1827 = vmatprep.subr.mxu0 0.0
        %1828 = vmatpush1.msra.mxu0 0.0
        %1829 = vmatprep.subr.mxu0 0.0
        %1830 = vmatpush1.msra.mxu0 0.0
        %1831 = vmatprep.subr.mxu0 0.0
        %1832 = vmatpush1.msra.mxu0 0.0
        %1833 = vmatprep.subr.mxu0 0.0
        %1834 = vmatpush1.msra.mxu0 0.0
        %1835 = vmatprep.subr.mxu0 0.0
        %1836 = vmatpush1.msra.mxu0 0.0
        %1837 = vmatprep.subr.mxu0 0.0
        %1838 = vmatpush1.msra.mxu0 0.0
        %1839 = vmatprep.subr.mxu0 0.0
        %1840 = vmatpush1.msra.mxu0 0.0
        %1841 = vmatprep.subr.mxu0 0.0
        %1842 = vmatpush1.msra.mxu0 0.0
        %1843 = vmatprep.subr.mxu0 0.0
        %1844 = vmatpush1.msra.mxu0 0.0
        %1845 = vmatprep.subr.mxu0 0.0
        %1846 = vmatpush1.msra.mxu0 0.0
        %1847 = vmatprep.subr.mxu0 0.0
        %1848 = vmatpush1.msra.mxu0 0.0
        %1849 = vmatprep.subr.mxu0 0.0
        %1850 = vmatpush1.msra.mxu0 0.0
        %1851 = vmatprep.subr.mxu0 0.0
        %1852 = vmatpush1.msra.mxu0 0.0
        %1853 = vmatprep.subr.mxu0 0.0
        %1854 = vmatpush1.msra.mxu0 0.0
        %1855 = vmatprep.subr.mxu0 0.0
        %1856 = vmatpush1.msra.mxu0 0.0
        %1857 = vmatprep.mubr.f32.mxu0 0.0
        %1858 = vmatmul.mubr.f32.gmra.mrb[0].mxu0 %v1717
        %v1859 = vpop.f32.mrb[0].mxu0
        %v1860 = vadd.f32 0.0, %v1859
        %v1861 = vpop.f32.mrb[0].mxu0
        %v1862 = vadd.f32 0.0, %v1861
        %1863 = vdwg.mxu0
        %v1864 = vadd.f32 %v1718, %v1789
        %v1865 = vadd.f32 %v1719, %v1791
        %v1866 = vadd.f32 %v1720, %v1860
        %v1867 = vadd.f32 %v1721, %v1862
        %v1868 = vxor.u32 %v1864, 2147483648
        %v1869 = vxor.u32 %v1865, 2147483648
        %v1870 = vxor.u32 %v1866, 2147483648
        %v1871 = vmul.f32 %v1868, 1.442695
        %v1872 = vpow.pop %v1871
        %v1873 = vmul.f32 %v1869, 1.442695
        %v1874 = vpow.pop %v1873
        %v1875 = vmul.f32 %v1870, 1.442695
        %v1876 = vpow.pop %v1875
        %v1877 = vadd.f32 %v1872, 1.0
        %v1878 = vadd.f32 %v1874, 1.0
        %v1879 = vadd.f32 %v1876, 1.0
        %v1880 = vrcp.pop %v1877
        %v1881 = vmul.f32 1.0, %v1880
        %v1882 = vrcp.pop %v1878
        %v1883 = vmul.f32 1.0, %v1882
        %v1884 = vrcp.pop %v1879
        %v1885 = vmul.f32 1.0, %v1884
        %v1886 = vtanh.pop %v1867
        %v1887 = vmul.f32 %v1883, %v1716
        %v1888 = vmul.f32 %v1881, %v1886
        %v1889 = vadd.f32 %v1887, %v1888
        %v1890 = vtanh.pop %v1889
        %v1891 = vmul.f32 %v1885, %v1890
        %vm1892 = vcmp.gt.s32.totalorder %v807, 5
        %v1893 = vsel %vm1892, 1, 0
        %1894 = vset.pattern.permute.xlu0 0
        %1895 = vperm.xlu0 %1894, %v1893
        %v1896 = vpop.permute.xlu0 %1895
        %vm1897 = vcmp.eq.s32.totalorder %v1896, 1
        %v1898 = vsel %vm1897, %v1889, %v1716
        %v1899 = vsel %vm1897, %v1891, %v1717
        %v1900 = vld [vmem:[#allocation2 + $0xc0] sm:$0xff]
        %v1901 = vld [vmem:[#allocation2 + $0xc8] sm:$0xff]
        %v1902 = vld [vmem:[#allocation2 + $0xd0] sm:$0xff]
        %v1903 = vld [vmem:[#allocation2 + $0xd8] sm:$0xff]
        %1904 = vmatprep.subr.mxu0 %v744
        %1905 = vmatpush1.msra.mxu0 %v743
        %1906 = vmatprep.subr.mxu0 %v748
        %1907 = vmatpush1.msra.mxu0 %v747
        %1908 = vmatprep.subr.mxu0 %v752
        %1909 = vmatpush1.msra.mxu0 %v751
        %1910 = vmatprep.subr.mxu0 %v756
        %1911 = vmatpush1.msra.mxu0 %v755
        %1912 = vmatprep.subr.mxu0 %v760
        %1913 = vmatpush1.msra.mxu0 %v759
        %1914 = vmatprep.subr.mxu0 %v764
        %1915 = vmatpush1.msra.mxu0 %v763
        %1916 = vmatprep.subr.mxu0 %v768
        %1917 = vmatpush1.msra.mxu0 %v767
        %1918 = vmatprep.subr.mxu0 %v772
        %1919 = vmatpush1.msra.mxu0 %v771
        %1920 = vmatprep.subr.mxu0 %v776
        %1921 = vmatpush1.msra.mxu0 %v775
        %1922 = vmatprep.subr.mxu0 %v780
        %1923 = vmatpush1.msra.mxu0 %v779
        %1924 = vmatprep.subr.mxu0 %v784
        %1925 = vmatpush1.msra.mxu0 %v783
        %1926 = vmatprep.subr.mxu0 %v788
        %1927 = vmatpush1.msra.mxu0 %v787
        %1928 = vmatprep.subr.mxu0 %v792
        %1929 = vmatpush1.msra.mxu0 %v791
        %1930 = vmatprep.subr.mxu0 %v796
        %1931 = vmatpush1.msra.mxu0 %v795
        %1932 = vmatprep.subr.mxu0 %v800
        %1933 = vmatpush1.msra.mxu0 %v799
        %1934 = vmatprep.subr.mxu0 %v804
        %1935 = vmatpush1.msra.mxu0 %v803
        %1936 = vmatprep.subr.mxu0 0.0
        %1937 = vmatpush1.msra.mxu0 0.0
        %1938 = vmatprep.subr.mxu0 0.0
        %1939 = vmatpush1.msra.mxu0 0.0
        %1940 = vmatprep.subr.mxu0 0.0
        %1941 = vmatpush1.msra.mxu0 0.0
        %1942 = vmatprep.subr.mxu0 0.0
        %1943 = vmatpush1.msra.mxu0 0.0
        %1944 = vmatprep.subr.mxu0 0.0
        %1945 = vmatpush1.msra.mxu0 0.0
        %1946 = vmatprep.subr.mxu0 0.0
        %1947 = vmatpush1.msra.mxu0 0.0
        %1948 = vmatprep.subr.mxu0 0.0
        %1949 = vmatpush1.msra.mxu0 0.0
        %1950 = vmatprep.subr.mxu0 0.0
        %1951 = vmatpush1.msra.mxu0 0.0
        %1952 = vmatprep.subr.mxu0 0.0
        %1953 = vmatpush1.msra.mxu0 0.0
        %1954 = vmatprep.subr.mxu0 0.0
        %1955 = vmatpush1.msra.mxu0 0.0
        %1956 = vmatprep.subr.mxu0 0.0
        %1957 = vmatpush1.msra.mxu0 0.0
        %1958 = vmatprep.subr.mxu0 0.0
        %1959 = vmatpush1.msra.mxu0 0.0
        %1960 = vmatprep.subr.mxu0 0.0
        %1961 = vmatpush1.msra.mxu0 0.0
        %1962 = vmatprep.subr.mxu0 0.0
        %1963 = vmatpush1.msra.mxu0 0.0
        %1964 = vmatprep.subr.mxu0 0.0
        %1965 = vmatpush1.msra.mxu0 0.0
        %1966 = vmatprep.subr.mxu0 0.0
        %1967 = vmatpush1.msra.mxu0 0.0
        %1968 = vmatprep.mubr.f32.mxu0 0.0
        %1969 = vmatmul.mubr.f32.gmra.mrb[0].mxu0 %v1899
        %v1970 = vpop.f32.mrb[0].mxu0
        %v1971 = vadd.f32 0.0, %v1970
        %v1972 = vpop.f32.mrb[0].mxu0
        %v1973 = vadd.f32 0.0, %v1972
        %1974 = vdwg.mxu0
        %1975 = vmatprep.subr.mxu0 %v746
        %1976 = vmatpush1.msra.mxu0 %v745
        %1977 = vmatprep.subr.mxu0 %v750
        %1978 = vmatpush1.msra.mxu0 %v749
        %1979 = vmatprep.subr.mxu0 %v754
        %1980 = vmatpush1.msra.mxu0 %v753
        %1981 = vmatprep.subr.mxu0 %v758
        %1982 = vmatpush1.msra.mxu0 %v757
        %1983 = vmatprep.subr.mxu0 %v762
        %1984 = vmatpush1.msra.mxu0 %v761
        %1985 = vmatprep.subr.mxu0 %v766
        %1986 = vmatpush1.msra.mxu0 %v765
        %1987 = vmatprep.subr.mxu0 %v770
        %1988 = vmatpush1.msra.mxu0 %v769
        %1989 = vmatprep.subr.mxu0 %v774
        %1990 = vmatpush1.msra.mxu0 %v773
        %1991 = vmatprep.subr.mxu0 %v778
        %1992 = vmatpush1.msra.mxu0 %v777
        %1993 = vmatprep.subr.mxu0 %v782
        %1994 = vmatpush1.msra.mxu0 %v781
        %1995 = vmatprep.subr.mxu0 %v786
        %1996 = vmatpush1.msra.mxu0 %v785
        %1997 = vmatprep.subr.mxu0 %v790
        %1998 = vmatpush1.msra.mxu0 %v789
        %1999 = vmatprep.subr.mxu0 %v794
        %2000 = vmatpush1.msra.mxu0 %v793
        %2001 = vmatprep.subr.mxu0 %v798
        %2002 = vmatpush1.msra.mxu0 %v797
        %2003 = vmatprep.subr.mxu0 %v802
        %2004 = vmatpush1.msra.mxu0 %v801
        %2005 = vmatprep.subr.mxu0 %v806
        %2006 = vmatpush1.msra.mxu0 %v805
        %2007 = vmatprep.subr.mxu0 0.0
        %2008 = vmatpush1.msra.mxu0 0.0
        %2009 = vmatprep.subr.mxu0 0.0
        %2010 = vmatpush1.msra.mxu0 0.0
        %2011 = vmatprep.subr.mxu0 0.0
        %2012 = vmatpush1.msra.mxu0 0.0
        %2013 = vmatprep.subr.mxu0 0.0
        %2014 = vmatpush1.msra.mxu0 0.0
        %2015 = vmatprep.subr.mxu0 0.0
        %2016 = vmatpush1.msra.mxu0 0.0
        %2017 = vmatprep.subr.mxu0 0.0
        %2018 = vmatpush1.msra.mxu0 0.0
        %2019 = vmatprep.subr.mxu0 0.0
        %2020 = vmatpush1.msra.mxu0 0.0
        %2021 = vmatprep.subr.mxu0 0.0
        %2022 = vmatpush1.msra.mxu0 0.0
        %2023 = vmatprep.subr.mxu0 0.0
        %2024 = vmatpush1.msra.mxu0 0.0
        %2025 = vmatprep.subr.mxu0 0.0
        %2026 = vmatpush1.msra.mxu0 0.0
        %2027 = vmatprep.subr.mxu0 0.0
        %2028 = vmatpush1.msra.mxu0 0.0
        %2029 = vmatprep.subr.mxu0 0.0
        %2030 = vmatpush1.msra.mxu0 0.0
        %2031 = vmatprep.subr.mxu0 0.0
        %2032 = vmatpush1.msra.mxu0 0.0
        %2033 = vmatprep.subr.mxu0 0.0
        %2034 = vmatpush1.msra.mxu0 0.0
        %2035 = vmatprep.subr.mxu0 0.0
        %2036 = vmatpush1.msra.mxu0 0.0
        %2037 = vmatprep.subr.mxu0 0.0
        %2038 = vmatpush1.msra.mxu0 0.0
        %2039 = vmatprep.mubr.f32.mxu0 0.0
        %2040 = vmatmul.mubr.f32.gmra.mrb[0].mxu0 %v1899
        %v2041 = vpop.f32.mrb[0].mxu0
        %v2042 = vadd.f32 0.0, %v2041
        %v2043 = vpop.f32.mrb[0].mxu0
        %v2044 = vadd.f32 0.0, %v2043
        %2045 = vdwg.mxu0
        %v2046 = vadd.f32 %v1900, %v1971
        %v2047 = vadd.f32 %v1901, %v1973
        %v2048 = vadd.f32 %v1902, %v2042
        %v2049 = vadd.f32 %v1903, %v2044
        %v2050 = vxor.u32 %v2046, 2147483648
        %v2051 = vxor.u32 %v2047, 2147483648
        %v2052 = vxor.u32 %v2048, 2147483648
        %v2053 = vmul.f32 %v2050, 1.442695
        %v2054 = vpow.pop %v2053
        %v2055 = vmul.f32 %v2051, 1.442695
        %v2056 = vpow.pop %v2055
        %v2057 = vmul.f32 %v2052, 1.442695
        %v2058 = vpow.pop %v2057
        %v2059 = vadd.f32 %v2054, 1.0
        %v2060 = vadd.f32 %v2056, 1.0
        %v2061 = vadd.f32 %v2058, 1.0
        %v2062 = vrcp.pop %v2059
        %v2063 = vmul.f32 1.0, %v2062
        %v2064 = vrcp.pop %v2060
        %v2065 = vmul.f32 1.0, %v2064
        %v2066 = vrcp.pop %v2061
        %v2067 = vmul.f32 1.0, %v2066
        %v2068 = vtanh.pop %v2049
        %v2069 = vmul.f32 %v2065, %v1898
        %v2070 = vmul.f32 %v2063, %v2068
        %v2071 = vadd.f32 %v2069, %v2070
        %v2072 = vtanh.pop %v2071
        %v2073 = vmul.f32 %v2067, %v2072
        %vm2074 = vcmp.gt.s32.totalorder %v807, 6
        %v2075 = vsel %vm2074, 1, 0
        %2076 = vset.pattern.permute.xlu0 0
        %2077 = vperm.xlu0 %2076, %v2075
        %v2078 = vpop.permute.xlu0 %2077
        %vm2079 = vcmp.eq.s32.totalorder %v2078, 1
        %v2080 = vsel %vm2079, %v2071, %v1898
        %v2081 = vsel %vm2079, %v2073, %v1899
        %v2082 = vld [vmem:[#allocation2 + $0xe0] sm:$0xff]
        %v2083 = vld [vmem:[#allocation2 + $0xe8] sm:$0xff]
        %v2084 = vld [vmem:[#allocation2 + $0xf0] sm:$0xff]
        %v2085 = vld [vmem:[#allocation2 + $0xf8] sm:$0xff]
        %2086 = vmatprep.subr.mxu0 %v744
        %2087 = vmatpush1.msra.mxu0 %v743
        %2088 = vmatprep.subr.mxu0 %v748
        %2089 = vmatpush1.msra.mxu0 %v747
        %2090 = vmatprep.subr.mxu0 %v752
        %2091 = vmatpush1.msra.mxu0 %v751
        %2092 = vmatprep.subr.mxu0 %v756
        %2093 = vmatpush1.msra.mxu0 %v755
        %2094 = vmatprep.subr.mxu0 %v760
        %2095 = vmatpush1.msra.mxu0 %v759
        %2096 = vmatprep.subr.mxu0 %v764
        %2097 = vmatpush1.msra.mxu0 %v763
        %2098 = vmatprep.subr.mxu0 %v768
        %2099 = vmatpush1.msra.mxu0 %v767
        %2100 = vmatprep.subr.mxu0 %v772
        %2101 = vmatpush1.msra.mxu0 %v771
        %2102 = vmatprep.subr.mxu0 %v776
        %2103 = vmatpush1.msra.mxu0 %v775
        %2104 = vmatprep.subr.mxu0 %v780
        %2105 = vmatpush1.msra.mxu0 %v779
        %2106 = vmatprep.subr.mxu0 %v784
        %2107 = vmatpush1.msra.mxu0 %v783
        %2108 = vmatprep.subr.mxu0 %v788
        %2109 = vmatpush1.msra.mxu0 %v787
        %2110 = vmatprep.subr.mxu0 %v792
        %2111 = vmatpush1.msra.mxu0 %v791
        %2112 = vmatprep.subr.mxu0 %v796
        %2113 = vmatpush1.msra.mxu0 %v795
        %2114 = vmatprep.subr.mxu0 %v800
        %2115 = vmatpush1.msra.mxu0 %v799
        %2116 = vmatprep.subr.mxu0 %v804
        %2117 = vmatpush1.msra.mxu0 %v803
        %2118 = vmatprep.subr.mxu0 0.0
        %2119 = vmatpush1.msra.mxu0 0.0
        %2120 = vmatprep.subr.mxu0 0.0
        %2121 = vmatpush1.msra.mxu0 0.0
        %2122 = vmatprep.subr.mxu0 0.0
        %2123 = vmatpush1.msra.mxu0 0.0
        %2124 = vmatprep.subr.mxu0 0.0
        %2125 = vmatpush1.msra.mxu0 0.0
        %2126 = vmatprep.subr.mxu0 0.0
        %2127 = vmatpush1.msra.mxu0 0.0
        %2128 = vmatprep.subr.mxu0 0.0
        %2129 = vmatpush1.msra.mxu0 0.0
        %2130 = vmatprep.subr.mxu0 0.0
        %2131 = vmatpush1.msra.mxu0 0.0
        %2132 = vmatprep.subr.mxu0 0.0
        %2133 = vmatpush1.msra.mxu0 0.0
        %2134 = vmatprep.subr.mxu0 0.0
        %2135 = vmatpush1.msra.mxu0 0.0
        %2136 = vmatprep.subr.mxu0 0.0
        %2137 = vmatpush1.msra.mxu0 0.0
        %2138 = vmatprep.subr.mxu0 0.0
        %2139 = vmatpush1.msra.mxu0 0.0
        %2140 = vmatprep.subr.mxu0 0.0
        %2141 = vmatpush1.msra.mxu0 0.0
        %2142 = vmatprep.subr.mxu0 0.0
        %2143 = vmatpush1.msra.mxu0 0.0
        %2144 = vmatprep.subr.mxu0 0.0
        %2145 = vmatpush1.msra.mxu0 0.0
        %2146 = vmatprep.subr.mxu0 0.0
        %2147 = vmatpush1.msra.mxu0 0.0
        %2148 = vmatprep.subr.mxu0 0.0
        %2149 = vmatpush1.msra.mxu0 0.0
        %2150 = vmatprep.mubr.f32.mxu0 0.0
        %2151 = vmatmul.mubr.f32.gmra.mrb[0].mxu0 %v2081
        %v2152 = vpop.f32.mrb[0].mxu0
        %v2153 = vadd.f32 0.0, %v2152
        %v2154 = vpop.f32.mrb[0].mxu0
        %v2155 = vadd.f32 0.0, %v2154
        %2156 = vdwg.mxu0
        %2157 = vmatprep.subr.mxu0 %v746
        %2158 = vmatpush1.msra.mxu0 %v745
        %2159 = vmatprep.subr.mxu0 %v750
        %2160 = vmatpush1.msra.mxu0 %v749
        %2161 = vmatprep.subr.mxu0 %v754
        %2162 = vmatpush1.msra.mxu0 %v753
        %2163 = vmatprep.subr.mxu0 %v758
        %2164 = vmatpush1.msra.mxu0 %v757
        %2165 = vmatprep.subr.mxu0 %v762
        %2166 = vmatpush1.msra.mxu0 %v761
        %2167 = vmatprep.subr.mxu0 %v766
        %2168 = vmatpush1.msra.mxu0 %v765
        %2169 = vmatprep.subr.mxu0 %v770
        %2170 = vmatpush1.msra.mxu0 %v769
        %2171 = vmatprep.subr.mxu0 %v774
        %2172 = vmatpush1.msra.mxu0 %v773
        %2173 = vmatprep.subr.mxu0 %v778
        %2174 = vmatpush1.msra.mxu0 %v777
        %2175 = vmatprep.subr.mxu0 %v782
        %2176 = vmatpush1.msra.mxu0 %v781
        %2177 = vmatprep.subr.mxu0 %v786
        %2178 = vmatpush1.msra.mxu0 %v785
        %2179 = vmatprep.subr.mxu0 %v790
        %2180 = vmatpush1.msra.mxu0 %v789
        %2181 = vmatprep.subr.mxu0 %v794
        %2182 = vmatpush1.msra.mxu0 %v793
        %2183 = vmatprep.subr.mxu0 %v798
        %2184 = vmatpush1.msra.mxu0 %v797
        %2185 = vmatprep.subr.mxu0 %v802
        %2186 = vmatpush1.msra.mxu0 %v801
        %2187 = vmatprep.subr.mxu0 %v806
        %2188 = vmatpush1.msra.mxu0 %v805
        %2189 = vmatprep.subr.mxu0 0.0
        %2190 = vmatpush1.msra.mxu0 0.0
        %2191 = vmatprep.subr.mxu0 0.0
        %2192 = vmatpush1.msra.mxu0 0.0
        %2193 = vmatprep.subr.mxu0 0.0
        %2194 = vmatpush1.msra.mxu0 0.0
        %2195 = vmatprep.subr.mxu0 0.0
        %2196 = vmatpush1.msra.mxu0 0.0
        %2197 = vmatprep.subr.mxu0 0.0
        %2198 = vmatpush1.msra.mxu0 0.0
        %2199 = vmatprep.subr.mxu0 0.0
        %2200 = vmatpush1.msra.mxu0 0.0
        %2201 = vmatprep.subr.mxu0 0.0
        %2202 = vmatpush1.msra.mxu0 0.0
        %2203 = vmatprep.subr.mxu0 0.0
        %2204 = vmatpush1.msra.mxu0 0.0
        %2205 = vmatprep.subr.mxu0 0.0
        %2206 = vmatpush1.msra.mxu0 0.0
        %2207 = vmatprep.subr.mxu0 0.0
        %2208 = vmatpush1.msra.mxu0 0.0
        %2209 = vmatprep.subr.mxu0 0.0
        %2210 = vmatpush1.msra.mxu0 0.0
        %2211 = vmatprep.subr.mxu0 0.0
        %2212 = vmatpush1.msra.mxu0 0.0
        %2213 = vmatprep.subr.mxu0 0.0
        %2214 = vmatpush1.msra.mxu0 0.0
        %2215 = vmatprep.subr.mxu0 0.0
        %2216 = vmatpush1.msra.mxu0 0.0
        %2217 = vmatprep.subr.mxu0 0.0
        %2218 = vmatpush1.msra.mxu0 0.0
        %2219 = vmatprep.subr.mxu0 0.0
        %2220 = vmatpush1.msra.mxu0 0.0
        %2221 = vmatprep.mubr.f32.mxu0 0.0
        %2222 = vmatmul.mubr.f32.gmra.mrb[0].mxu0 %v2081
        %v2223 = vpop.f32.mrb[0].mxu0
        %v2224 = vadd.f32 0.0, %v2223
        %v2225 = vpop.f32.mrb[0].mxu0
        %v2226 = vadd.f32 0.0, %v2225
        %2227 = vdwg.mxu0
        %v2228 = vadd.f32 %v2082, %v2153
        %v2229 = vadd.f32 %v2083, %v2155
        %v2230 = vadd.f32 %v2084, %v2224
        %v2231 = vadd.f32 %v2085, %v2226
        %v2232 = vxor.u32 %v2228, 2147483648
        %v2233 = vxor.u32 %v2229, 2147483648
        %v2234 = vxor.u32 %v2230, 2147483648
        %v2235 = vmul.f32 %v2232, 1.442695
        %v2236 = vpow.pop %v2235
        %v2237 = vmul.f32 %v2233, 1.442695
        %v2238 = vpow.pop %v2237
        %v2239 = vmul.f32 %v2234, 1.442695
        %v2240 = vpow.pop %v2239
        %v2241 = vadd.f32 %v2236, 1.0
        %v2242 = vadd.f32 %v2238, 1.0
        %v2243 = vadd.f32 %v2240, 1.0
        %v2244 = vrcp.pop %v2241
        %v2245 = vmul.f32 1.0, %v2244
        %v2246 = vrcp.pop %v2242
        %v2247 = vmul.f32 1.0, %v2246
        %v2248 = vrcp.pop %v2243
        %v2249 = vmul.f32 1.0, %v2248
        %v2250 = vtanh.pop %v2231
        %v2251 = vmul.f32 %v2247, %v2080
        %v2252 = vmul.f32 %v2245, %v2250
        %v2253 = vadd.f32 %v2251, %v2252
        %v2254 = vtanh.pop %v2253
        %v2255 = vmul.f32 %v2249, %v2254
        %vm2256 = vcmp.gt.s32.totalorder %v807, 7
        %v2257 = vsel %vm2256, 1, 0
        %2258 = vset.pattern.permute.xlu0 0
        %2259 = vperm.xlu0 %2258, %v2257
        %v2260 = vpop.permute.xlu0 %2259
        %vm2261 = vcmp.eq.s32.totalorder %v2260, 1
        %v2262 = vsel %vm2261, %v2255, %v2081
        %v2263 = vld [vmem:[#allocation3 + $0x260] sm:$0xff]
        %v2264 = vld [vmem:[#allocation3 + $0x280] sm:$0xff]
        %v2265 = vld [vmem:[#allocation3 + $0x2a0] sm:$0xff]
        %v2266 = vld [vmem:[#allocation3 + $0x2c0] sm:$0xff]
        %v2267 = vld [vmem:[#allocation3 + $0x2e0] sm:$0xff]
        %v2268 = vld [vmem:[#allocation3 + $0x300] sm:$0xff]
        %v2269 = vld [vmem:[#allocation3 + $0x320] sm:$0xff]
        %v2270 = vld [vmem:[#allocation3 + $0x340] sm:$0xff]
        %v2271 = vld [vmem:[#allocation3 + $0x360] sm:$0xff]
        %v2272 = vld [vmem:[#allocation3 + $0x380] sm:$0xff]
        %v2273 = vld [vmem:[#allocation3 + $0x3a0] sm:$0xff]
        %v2274 = vld [vmem:[#allocation3 + $0x3c0] sm:$0xff]
        %v2275 = vld [vmem:[#allocation3 + $0x3e0] sm:$0xff]
        %v2276 = vld [vmem:[#allocation3 + $0x400] sm:$0xff]
        %v2277 = vld [vmem:[#allocation3 + $0x420] sm:$0xff]
        %v2278 = vld [vmem:[#allocation3 + $0x440] sm:$0xff]
        %v2279 = vld [vmem:[#allocation3 + $0x460] ss:$0 sm:$0xff]
        %2280 = vmatprep.subr.mxu0 0.0
        %2281 = vmatpush1.msra.mxu0 %v2263
        %2282 = vmatprep.subr.mxu0 0.0
        %2283 = vmatpush1.msra.mxu0 %v2264
        %2284 = vmatprep.subr.mxu0 0.0
        %2285 = vmatpush1.msra.mxu0 %v2265
        %2286 = vmatprep.subr.mxu0 0.0
        %2287 = vmatpush1.msra.mxu0 %v2266
        %2288 = vmatprep.subr.mxu0 0.0
        %2289 = vmatpush1.msra.mxu0 %v2267
        %2290 = vmatprep.subr.mxu0 0.0
        %2291 = vmatpush1.msra.mxu0 %v2268
        %2292 = vmatprep.subr.mxu0 0.0
        %2293 = vmatpush1.msra.mxu0 %v2269
        %2294 = vmatprep.subr.mxu0 0.0
        %2295 = vmatpush1.msra.mxu0 %v2270
        %2296 = vmatprep.subr.mxu0 0.0
        %2297 = vmatpush1.msra.mxu0 %v2271
        %2298 = vmatprep.subr.mxu0 0.0
        %2299 = vmatpush1.msra.mxu0 %v2272
        %2300 = vmatprep.subr.mxu0 0.0
        %2301 = vmatpush1.msra.mxu0 %v2273
        %2302 = vmatprep.subr.mxu0 0.0
        %2303 = vmatpush1.msra.mxu0 %v2274
        %2304 = vmatprep.subr.mxu0 0.0
        %2305 = vmatpush1.msra.mxu0 %v2275
        %2306 = vmatprep.subr.mxu0 0.0
        %2307 = vmatpush1.msra.mxu0 %v2276
        %2308 = vmatprep.subr.mxu0 0.0
        %2309 = vmatpush1.msra.mxu0 %v2277
        %2310 = vmatprep.subr.mxu0 0.0
        %2311 = vmatpush1.msra.mxu0 %v2278
        %2312 = vmatprep.subr.mxu0 0.0
        %2313 = vmatpush1.msra.mxu0 0.0
        %2314 = vmatprep.subr.mxu0 0.0
        %2315 = vmatpush1.msra.mxu0 0.0
        %2316 = vmatprep.subr.mxu0 0.0
        %2317 = vmatpush1.msra.mxu0 0.0
        %2318 = vmatprep.subr.mxu0 0.0
        %2319 = vmatpush1.msra.mxu0 0.0
        %2320 = vmatprep.subr.mxu0 0.0
        %2321 = vmatpush1.msra.mxu0 0.0
        %2322 = vmatprep.subr.mxu0 0.0
        %2323 = vmatpush1.msra.mxu0 0.0
        %2324 = vmatprep.subr.mxu0 0.0
        %2325 = vmatpush1.msra.mxu0 0.0
        %2326 = vmatprep.subr.mxu0 0.0
        %2327 = vmatpush1.msra.mxu0 0.0
        %2328 = vmatprep.subr.mxu0 0.0
        %2329 = vmatpush1.msra.mxu0 0.0
        %2330 = vmatprep.subr.mxu0 0.0
        %2331 = vmatpush1.msra.mxu0 0.0
        %2332 = vmatprep.subr.mxu0 0.0
        %2333 = vmatpush1.msra.mxu0 0.0
        %2334 = vmatprep.subr.mxu0 0.0
        %2335 = vmatpush1.msra.mxu0 0.0
        %2336 = vmatprep.subr.mxu0 0.0
        %2337 = vmatpush1.msra.mxu0 0.0
        %2338 = vmatprep.subr.mxu0 0.0
        %2339 = vmatpush1.msra.mxu0 0.0
        %2340 = vmatprep.subr.mxu0 0.0
        %2341 = vmatpush1.msra.mxu0 0.0
        %2342 = vmatprep.subr.mxu0 0.0
        %2343 = vmatpush1.msra.mxu0 0.0
        %2344 = vmatprep.mubr.f32.mxu0 0.0
        %2345 = vmatmul.mubr.f32.gmra.mrb[0].mxu0 %v2262
        %v2346 = vpop.f32.mrb[0].mxu0
        %v2347 = vadd.f32 %v2279, %v2346
        %v2348 = vpop.f32.mrb[0].mxu0
        %2349 = vdwg.mxu0
        %2350 = vmax.xlane.f32.xlu0 %v2347
        %v2351 = vpop.xlane.xlu0 %2350
        %v2352 = vsub.f32 %v2347, %v2351
        %v2353 = vmul.f32 %v2352, 1.442695
        %v2354 = vpow.pop %v2353
        %2355 = vadd.xlane.f32.xlu0 %v2354
        %v2356 = vpop.xlane.xlu0 %2355
        %v2357 = vlog2.pop %v2356
        %v2358 = vmul.f32 %v2357, 0.6931472
        %v2359 = vsub.f32 %v2352, %v2358
        %2360 = vst [vmem:[%s229] sm:$0xff] %v2359
        %p2361 = scmp.lt.s32.totalorder %s16, 1
        %s2362 = scalar_select %p2361, %s16, 1
        %s2363 = smul.addr %s2362, 8
        %s2364 = scalar_lea.vmem %s4, %s2363
        // Predicated region
        $region41: #{lstm_classifier_forward_batch.1} parent=35 // pred_check
          %p2365 = pneg %p128
        $region42: #{lstm_classifier_forward_batch.1} parent=35 // pred_check_branch
          %2367 = sbr.rel (%p2365) target = $region44
        $region43: #{lstm_classifier_forward_batch.1} parent=35 // pred_region
          _
        $region44: #{lstm_classifier_forward_batch.1} parent=35 // pred_fallthru
          _
      $region36: #{lstm_classifier_forward_batch.1} parent=5 // pred_fallthru
        _
      %p2368 = scmp.le.s32.totalorder 2, %s11
      // Predicated region
      $region45: #{lstm_classifier_forward_batch.1} parent=5 // pred_check
        %p2369 = pneg %p2368
      $region46: #{lstm_classifier_forward_batch.1} parent=5 // pred_check_branch
        %2371 = sbr.rel (%p2369) target = $region48
      $region47: #{lstm_classifier_forward_batch.1} parent=5 // pred_region
        %s2372 = ssub.s32 %s11, 2
        // Predicated region
        $region49: #{lstm_classifier_forward_batch.1} parent=47 // pred_check
          %p2373 = pneg %p134
        $region50: #{lstm_classifier_forward_batch.1} parent=47 // pred_check_branch
          %2375 = sbr.rel (%p2373) target = $region52
        $region51: #{lstm_classifier_forward_batch.1} parent=47 // pred_region
          %p2376 = scmp.lt.s32.totalorder %s17, 1
          %s2377 = scalar_select %p2376, %s17, 1
          %s2378 = smul.addr %s2377, 8
          %s2379 = scalar_lea.vmem %s4, %s2378
        $region52: #{lstm_classifier_forward_batch.1} parent=47 // pred_fallthru
          _
      $region48: #{lstm_classifier_forward_batch.1} parent=5 // pred_fallthru
        _
    $region6: #{lstm_classifier_forward_batch.1} parent=1 // loop_footer
      %s15 = sadd.s32 1, %s11
    $region7: #{lstm_classifier_forward_batch.1} parent=1 // loop_footer_branch
      %10 = sbr.rel target = $region3
    $region8: #{lstm_classifier_forward_batch.1} parent=1 // loop_exit
      _
    %2380 = vsyncpa [#allocation4], 1
    %s2381 = scalar_lea.sflag [#allocation4], 1
    %2382 = vsyncpa %s2381, 1

</llo_original>
